<compile_context>
chip_gen: v5e
topology: v5e:2x2
jax: 0.10.0
libtpu: 0.0.40
codegen_flags: <defaults>
</compile_context>

<pallas_src>
import functools

import jax
import jax.numpy as jnp
from jax import lax
from jax.experimental import pallas as pl
from jax.experimental.pallas import tpu as pltpu

IN_FEATURES = 28 * 28      # 784
K_PAD = 896                # 7 * 128, lane-aligned K for the first matmul
HIDDEN = 512
N_CLASSES = 10
N_PAD = 128                # lane-dense classifier dim (sliced back to 10)
MAX_TILE_B = 512           # per-step VMEM ~8 MiB -> fits every generation
NEG_BIG = -1e30            # f32 bias for padded class lanes -> exp() == 0


def _sigmoid(x):
    # sigmoid(x) == 0.5*(tanh(0.5*x) + 1): a single EUP transcendental.
    return 0.5 * (jnp.tanh(0.5 * x) + 1.0)


def mlp_kernel(x_ref, w1_ref, b1_ref, w2_ref, b2_ref, w3_ref, b3_ref, out_ref,
               *, sub_m, n_sub):
    # Hoist VMEM-resident weights and pre-broadcast biases out of the sub-tile
    # loop (JAX does not CSE broadcast_in_dim inside loops).
    w1 = w1_ref[...]
    w2 = w2_ref[...]
    w3 = w3_ref[...]
    b1 = jnp.broadcast_to(b1_ref[...], (sub_m, HIDDEN))
    b2 = jnp.broadcast_to(b2_ref[...], (sub_m, HIDDEN))
    b3 = jnp.broadcast_to(b3_ref[...], (sub_m, N_PAD))

    def body(i, carry):
        r0 = pl.multiple_of(i * sub_m, 8)
        x = x_ref[pl.ds(r0, sub_m), :]

        # Layer 1: Linear(784 -> 512) + Sigmoid (K zero-padded to 896, exact).
        h1 = jnp.dot(x, w1, preferred_element_type=jnp.float32) + b1
        h1 = _sigmoid(h1)

        # Layer 2: Linear(512 -> 512) + Sigmoid.
        h2 = jnp.dot(h1.astype(jnp.bfloat16), w2,
                     preferred_element_type=jnp.float32) + b2
        h2 = _sigmoid(h2)

        # Layer 3: Linear(512 -> 10, padded to 128) + Softmax over 128 lanes.
        logits = jnp.dot(h2.astype(jnp.bfloat16), w3,
                         preferred_element_type=jnp.float32) + b3
        m = jnp.max(logits, axis=1, keepdims=True)
        e = jnp.exp(logits - m)
        denom = jnp.sum(e, axis=1, keepdims=True)
        out_ref[pl.ds(r0, sub_m), :] = e * pl.reciprocal(denom, approx=True)
        return carry

    # unroll=True: the independent sub-tile chains let the scheduler issue
    # sub-tile i+1's MXU work while sub-tile i's EUP/XLU work drains.
    lax.fori_loop(0, n_sub, body, 0, unroll=True)


def _tiling(batch):
    """Pick (tile_b, n_sub) with tile_b % (8 * n_sub) == 0."""
    b8 = -(-batch // 8) * 8                      # round batch up to multiple of 8
    if b8 <= 64:
        return b8, 1                             # tiny batch: single small tile
    if b8 <= 256:
        return (b8, 2) if b8 % 16 == 0 else (b8, 1)
    # Large batch: >= 2 tiles so both v7x TensorCores get work via the
    # "parallel" grid axis, capped at MAX_TILE_B rows per tile.
    tile = min(MAX_TILE_B, -(-b8 // 64) * 32)    # ~b8/2 rounded up to 32
    return tile, 4


def init_params(key):
    # Deterministic init mimicking torch.nn.Linear default:
    # U(-1/sqrt(fan_in), 1/sqrt(fan_in)) for both weights and biases.
    # Weights stored transposed relative to torch: (fan_in, fan_out) so x @ W.
    def linear_init(k, fan_in, fan_out):
        kw, kb = jax.random.split(k)
        bound = 1.0 / jnp.sqrt(fan_in)
        w = jax.random.uniform(kw, (fan_in, fan_out), jnp.float32, -bound, bound)
        b = jax.random.uniform(kb, (1, fan_out), jnp.float32, -bound, bound)
        return w, b

    k1, k2, k3 = jax.random.split(key, 3)
    w1, b1 = linear_init(k1, IN_FEATURES, HIDDEN)
    w2, b2 = linear_init(k2, HIDDEN, HIDDEN)
    w3, b3 = linear_init(k3, HIDDEN, N_CLASSES)
    return w1, b1, w2, b2, w3, b3


def prepare_params(params):
    """Pad K (784->896) and class dim (10->128), cast weights to bf16 for MXU."""
    w1, b1, w2, b2, w3, b3 = params
    w1p = jnp.zeros((K_PAD, HIDDEN), jnp.float32).at[:IN_FEATURES].set(w1)
    w3p = jnp.zeros((HIDDEN, N_PAD), jnp.float32).at[:, :N_CLASSES].set(w3)
    # b3 must stay f32: -1e30 in bf16 would become -inf and risk inf-inf NaNs.
    b3p = jnp.full((1, N_PAD), NEG_BIG, jnp.float32).at[:, :N_CLASSES].set(b3)
    return (w1p.astype(jnp.bfloat16), b1.astype(jnp.float32),
            w2.astype(jnp.bfloat16), b2.astype(jnp.float32),
            w3p.astype(jnp.bfloat16), b3p)


@jax.jit
def mlp_forward(x_nchw, prepared):
    w1, b1, w2, b2, w3, b3 = prepared
    B = x_nchw.shape[0]
    tile_b, n_sub = _tiling(B)
    n_tiles = pl.cdiv(B, tile_b)
    b_pad = n_tiles * tile_b

    # nn.Flatten + a single fused pad: (B,1,28,28) -> (b_pad, 896) bf16.
    x2d = x_nchw.reshape(B, -1).astype(jnp.bfloat16)
    x_padded = jnp.pad(x2d, ((0, b_pad - B), (0, K_PAD - IN_FEATURES)))

    resident = lambda i: (0, 0)  # constant index_map -> weights stay in VMEM
    kernel = functools.partial(mlp_kernel, sub_m=tile_b // n_sub, n_sub=n_sub)

    out = pl.pallas_call(
        kernel,
        out_shape=jax.ShapeDtypeStruct((b_pad, N_PAD), jnp.float32),
        grid=(n_tiles,),
        in_specs=[
            pl.BlockSpec((tile_b, K_PAD), lambda i: (i, 0)),  # x: pipelined tiles
            pl.BlockSpec((K_PAD, HIDDEN), resident),          # w1
            pl.BlockSpec((1, HIDDEN), resident),              # b1
            pl.BlockSpec((HIDDEN, HIDDEN), resident),         # w2
            pl.BlockSpec((1, HIDDEN), resident),              # b2
            pl.BlockSpec((HIDDEN, N_PAD), resident),          # w3
            pl.BlockSpec((1, N_PAD), resident),               # b3
        ],
        out_specs=pl.BlockSpec((tile_b, N_PAD), lambda i: (i, 0)),
        compiler_params=pltpu.CompilerParams(
            dimension_semantics=("parallel",),    # megacore batch sharding
            vmem_limit_bytes=32 * 1024 * 1024,    # headroom (v5e default 16 MiB)
        ),
    )(x_padded, w1, b1, w2, b2, w3, b3)

    # Strip batch padding and padded class lanes.
    return out[:B, :N_CLASSES]


def ref_forward_f32(x, params):
    # Pure f32 JAX reference matching the PyTorch module exactly.
    w1, b1, w2, b2, w3, b3 = params
    xf = x.reshape(x.shape[0], -1)
    h1 = jax.nn.sigmoid(xf @ w1 + b1)
    h2 = jax.nn.sigmoid(h1 @ w2 + b2)
    return jax.nn.softmax(h2 @ w3 + b3, axis=1)


if __name__ == "__main__":
    key = jax.random.PRNGKey(0)
    k_params, k_x1, k_x2 = jax.random.split(key, 3)

    params = init_params(k_params)
    prepared = prepare_params(params)

    # Small MNIST-shaped batch: NCHW (8, 1, 28, 28) -> single tile path.
    B1 = 8
    x1 = jax.random.normal(k_x1, (B1, 1, 28, 28), dtype=jnp.float32)
    out1 = jax.block_until_ready(mlp_forward(x1, prepared))
    ref1 = ref_forward_f32(x1, params)
    assert out1.shape == (B1, N_CLASSES)
    assert jnp.allclose(out1, ref1, atol=2e-2, rtol=2e-2), float(
        jnp.max(jnp.abs(out1 - ref1)))
    assert jnp.allclose(jnp.sum(out1, axis=1), 1.0, atol=5e-3)

    # Larger batch exercising the multi-tile grid + in-kernel sub-tiling path.
    B2 = 300
    x2 = jax.random.normal(k_x2, (B2, 1, 28, 28), dtype=jnp.float32)
    out2 = jax.block_until_ready(mlp_forward(x2, prepared))
    ref2 = ref_forward_f32(x2, params)
    assert out2.shape == (B2, N_CLASSES)
    assert jnp.allclose(out2, ref2, atol=2e-2, rtol=2e-2), float(
        jnp.max(jnp.abs(out2 - ref2)))
    assert jnp.allclose(jnp.sum(out2, axis=1), 1.0, atol=5e-3)

    print("KERNEL_OK")
</pallas_src>

<mosaic_0001>
module attributes {stable_mosaic.version = 11 : i64} {
  func.func @mlp_kernel(%arg0: i32, %arg1: memref<8x896xbf16, #tpu.memory_space<vmem>>, %arg2: memref<896x512xbf16, #tpu.memory_space<vmem>>, %arg3: memref<1x512xf32, #tpu.memory_space<vmem>>, %arg4: memref<512x512xbf16, #tpu.memory_space<vmem>>, %arg5: memref<1x512xf32, #tpu.memory_space<vmem>>, %arg6: memref<512x128xbf16, #tpu.memory_space<vmem>>, %arg7: memref<1x128xf32, #tpu.memory_space<vmem>>, %arg8: memref<8x128xf32, #tpu.memory_space<vmem>>) attributes {dimension_semantics = [#tpu.dimension_semantics<parallel>], iteration_bounds = array<i64: 1>, scalar_prefetch = 0 : i64, scratch_operands = 0 : i64, tpu.core_type = #tpu.core_type<tc>, window_params = [{transform_indices = @transform_0, window_bounds = array<i64: 8, 896>}, {pipeline_mode = #tpu.pipeline_mode<synchronous>, transform_indices = @transform_1, window_bounds = array<i64: 896, 512>}, {pipeline_mode = #tpu.pipeline_mode<synchronous>, transform_indices = @transform_2, window_bounds = array<i64: 1, 512>}, {pipeline_mode = #tpu.pipeline_mode<synchronous>, transform_indices = @transform_3, window_bounds = array<i64: 512, 512>}, {pipeline_mode = #tpu.pipeline_mode<synchronous>, transform_indices = @transform_4, window_bounds = array<i64: 1, 512>}, {pipeline_mode = #tpu.pipeline_mode<synchronous>, transform_indices = @transform_5, window_bounds = array<i64: 512, 128>}, {pipeline_mode = #tpu.pipeline_mode<synchronous>, transform_indices = @transform_6, window_bounds = array<i64: 1, 128>}, {transform_indices = @transform_7, window_bounds = array<i64: 8, 128>}]} {
    %c0 = arith.constant 0 : index
    %c0_0 = arith.constant 0 : index
    %0 = vector.load %arg2[%c0, %c0_0] : memref<896x512xbf16, #tpu.memory_space<vmem>>, vector<896x512xbf16>
    %c0_1 = arith.constant 0 : index
    %c0_2 = arith.constant 0 : index
    %1 = vector.load %arg4[%c0_1, %c0_2] : memref<512x512xbf16, #tpu.memory_space<vmem>>, vector<512x512xbf16>
    %c0_3 = arith.constant 0 : index
    %c0_4 = arith.constant 0 : index
    %2 = vector.load %arg6[%c0_3, %c0_4] : memref<512x128xbf16, #tpu.memory_space<vmem>>, vector<512x128xbf16>
    %c0_5 = arith.constant 0 : index
    %c0_6 = arith.constant 0 : index
    %3 = vector.load %arg3[%c0_5, %c0_6] : memref<1x512xf32, #tpu.memory_space<vmem>>, vector<1x512xf32>
    %4 = vector.shape_cast %3 : vector<1x512xf32> to vector<1x512xf32>
    %5 = vector.broadcast %4 : vector<1x512xf32> to vector<8x512xf32>
    %c0_7 = arith.constant 0 : index
    %c0_8 = arith.constant 0 : index
    %6 = vector.load %arg5[%c0_7, %c0_8] : memref<1x512xf32, #tpu.memory_space<vmem>>, vector<1x512xf32>
    %7 = vector.shape_cast %6 : vector<1x512xf32> to vector<1x512xf32>
    %8 = vector.broadcast %7 : vector<1x512xf32> to vector<8x512xf32>
    %c0_9 = arith.constant 0 : index
    %c0_10 = arith.constant 0 : index
    %9 = vector.load %arg7[%c0_9, %c0_10] : memref<1x128xf32, #tpu.memory_space<vmem>>, vector<1x128xf32>
    %10 = vector.shape_cast %9 : vector<1x128xf32> to vector<1x128xf32>
    %11 = vector.broadcast %10 : vector<1x128xf32> to vector<8x128xf32>
    %c0_i32 = arith.constant 0 : i32
    %c8_i32 = arith.constant 8 : i32
    %12 = arith.muli %c0_i32, %c8_i32 : i32
    %13 = tpu.assume_multiple %12, 8 : i32
    %14 = arith.index_cast %13 : i32 to index
    %c0_11 = arith.constant 0 : index
    %15 = vector.load %arg1[%14, %c0_11] : memref<8x896xbf16, #tpu.memory_space<vmem>>, vector<8x896xbf16>
    %cst = arith.constant dense<0.000000e+00> : vector<8x512xf32>
    %16 = tpu.matmul %15, %0, %cst {dimension_numbers = #tpu.dot_dimension_numbers<[1], [0], [0], [1], [0, 0, 1, 1], [], []>} : vector<8x896xbf16>, vector<896x512xbf16>, vector<8x512xf32> -> vector<8x512xf32>
    %17 = arith.addf %16, %5 : vector<8x512xf32>
    %cst_12 = arith.constant 5.000000e-01 : f32
    %18 = vector.broadcast %cst_12 : f32 to vector<8x512xf32>
    %19 = arith.mulf %18, %17 : vector<8x512xf32>
    %20 = math.tanh %19 : vector<8x512xf32>
    %cst_13 = arith.constant 1.000000e+00 : f32
    %21 = vector.broadcast %cst_13 : f32 to vector<8x512xf32>
    %22 = arith.addf %20, %21 : vector<8x512xf32>
    %cst_14 = arith.constant 5.000000e-01 : f32
    %23 = vector.broadcast %cst_14 : f32 to vector<8x512xf32>
    %24 = arith.mulf %23, %22 : vector<8x512xf32>
    %25 = arith.truncf %24 : vector<8x512xf32> to vector<8x512xbf16>
    %cst_15 = arith.constant dense<0.000000e+00> : vector<8x512xf32>
    %26 = tpu.matmul %25, %1, %cst_15 {dimension_numbers = #tpu.dot_dimension_numbers<[1], [0], [0], [1], [0, 0, 1, 1], [], []>} : vector<8x512xbf16>, vector<512x512xbf16>, vector<8x512xf32> -> vector<8x512xf32>
    %27 = arith.addf %26, %8 : vector<8x512xf32>
    %cst_16 = arith.constant 5.000000e-01 : f32
    %28 = vector.broadcast %cst_16 : f32 to vector<8x512xf32>
    %29 = arith.mulf %28, %27 : vector<8x512xf32>
    %30 = math.tanh %29 : vector<8x512xf32>
    %cst_17 = arith.constant 1.000000e+00 : f32
    %31 = vector.broadcast %cst_17 : f32 to vector<8x512xf32>
    %32 = arith.addf %30, %31 : vector<8x512xf32>
    %cst_18 = arith.constant 5.000000e-01 : f32
    %33 = vector.broadcast %cst_18 : f32 to vector<8x512xf32>
    %34 = arith.mulf %33, %32 : vector<8x512xf32>
    %35 = arith.truncf %34 : vector<8x512xf32> to vector<8x512xbf16>
    %cst_19 = arith.constant dense<0.000000e+00> : vector<8x128xf32>
    %36 = tpu.matmul %35, %2, %cst_19 {dimension_numbers = #tpu.dot_dimension_numbers<[1], [0], [0], [1], [0, 0, 1, 1], [], []>} : vector<8x512xbf16>, vector<512x128xbf16>, vector<8x128xf32> -> vector<8x128xf32>
    %37 = arith.addf %36, %11 : vector<8x128xf32>
    %cst_20 = arith.constant dense<0xFF800000> : vector<8xf32>
    %38 = vector.multi_reduction <maximumf>, %37, %cst_20 [1] : vector<8x128xf32> to vector<8xf32>
    %39 = vector.shape_cast %38 : vector<8xf32> to vector<8x1xf32>
    %40 = vector.broadcast %39 : vector<8x1xf32> to vector<8x128xf32>
    %41 = arith.subf %37, %40 : vector<8x128xf32>
    %42 = math.exp %41 : vector<8x128xf32>
    %cst_21 = arith.constant dense<0.000000e+00> : vector<8xf32>
    %43 = vector.multi_reduction <add>, %42, %cst_21 [1] : vector<8x128xf32> to vector<8xf32>
    %44 = vector.shape_cast %43 : vector<8xf32> to vector<8x1xf32>
    %45 = tpu.reciprocal %44 {approx = true} : vector<8x1xf32> -> vector<8x1xf32>
    %46 = vector.broadcast %45 : vector<8x1xf32> to vector<8x128xf32>
    %47 = arith.mulf %42, %46 : vector<8x128xf32>
    %48 = arith.index_cast %13 : i32 to index
    %c0_22 = arith.constant 0 : index
    %49 = vector.load %arg8[%48, %c0_22] : memref<8x128xf32, #tpu.memory_space<vmem>>, vector<8x128xf32>
    tpu.vector_store %arg8[%48, %c0_22], %47 {strides = array<i32>} : memref<8x128xf32, #tpu.memory_space<vmem>>, vector<8x128xf32>,
    %c1_i32 = arith.constant 1 : i32
    return
  }
  func.func @transform_0(%arg0: i32) -> (i32, i32) {
    %c0_i32 = arith.constant 0 : i32
    %c0_i32_0 = arith.constant 0 : i32
    return %arg0, %c0_i32 : i32, i32
  }
  func.func @transform_1(%arg0: i32) -> (i32, i32) {
    %c0_i32 = arith.constant 0 : i32
    %c0_i32_0 = arith.constant 0 : i32
    %c0_i32_1 = arith.constant 0 : i32
    return %c0_i32, %c0_i32_0 : i32, i32
  }
  func.func @transform_2(%arg0: i32) -> (i32, i32) {
    %c0_i32 = arith.constant 0 : i32
    %c0_i32_0 = arith.constant 0 : i32
    %c0_i32_1 = arith.constant 0 : i32
    return %c0_i32, %c0_i32_0 : i32, i32
  }
  func.func @transform_3(%arg0: i32) -> (i32, i32) {
    %c0_i32 = arith.constant 0 : i32
    %c0_i32_0 = arith.constant 0 : i32
    %c0_i32_1 = arith.constant 0 : i32
    return %c0_i32, %c0_i32_0 : i32, i32
  }
  func.func @transform_4(%arg0: i32) -> (i32, i32) {
    %c0_i32 = arith.constant 0 : i32
    %c0_i32_0 = arith.constant 0 : i32
    %c0_i32_1 = arith.constant 0 : i32
    return %c0_i32, %c0_i32_0 : i32, i32
  }
  func.func @transform_5(%arg0: i32) -> (i32, i32) {
    %c0_i32 = arith.constant 0 : i32
    %c0_i32_0 = arith.constant 0 : i32
    %c0_i32_1 = arith.constant 0 : i32
    return %c0_i32, %c0_i32_0 : i32, i32
  }
  func.func @transform_6(%arg0: i32) -> (i32, i32) {
    %c0_i32 = arith.constant 0 : i32
    %c0_i32_0 = arith.constant 0 : i32
    %c0_i32_1 = arith.constant 0 : i32
    return %c0_i32, %c0_i32_0 : i32, i32
  }
  func.func @transform_7(%arg0: i32) -> (i32, i32) {
    %c0_i32 = arith.constant 0 : i32
    %c0_i32_0 = arith.constant 0 : i32
    return %arg0, %c0_i32 : i32, i32
  }
}

</mosaic_0001>

<llo_original>
// kernel: mlp_forward.1
$region0: #{mlp_forward.1}
  #allocation0 [shape = 'u32[]', space=smem, size = 0x4, offset = 0x4, fixed_abs, tag = 'smem constant byte address 0x4 - core index']
  #allocation1 [shape = 'u32[72,128]{1,0:T(1,128)}', space=vmem, size = 0x9000, scoped, tag = 'internal scratch']
  %s0 = inlined_call_operand.vmem [shape: bf16[8,896], index: 0, kind: input, shape index: {}]
  %s1 = inlined_call_operand.hbm [shape: bf16[896,512], index: 1, kind: input, shape index: {}]
  %s2 = inlined_call_operand.vmem [shape: f32[1,512], index: 2, kind: input, shape index: {}]
  %s3 = inlined_call_operand.hbm [shape: bf16[512,512], index: 3, kind: input, shape index: {}]
  %s4 = inlined_call_operand.vmem [shape: f32[1,512], index: 4, kind: input, shape index: {}]
  %s5 = inlined_call_operand.vmem [shape: bf16[512,128], index: 5, kind: input, shape index: {}]
  %s6 = inlined_call_operand.vmem [shape: f32[1,128], index: 6, kind: input, shape index: {}]
  %s7 = inlined_call_operand.hbm [shape: f32[8,128], index: 7, kind: output, shape index: {}]
  %s8 = sld [smem:[#allocation0]]
  $region46: #{mlp_forward.1} parent=0
    _
  %s10 = ssub.s32 1, %s8
  %s11 = scalar_select 0, %s10, %s8
  $region1: #{mlp_forward.1} parent=0
    #allocation2 [shape = 'u8[917504]{0}', space=vmem, size = 0xe0000, scoped, tag = 'input window, operand 1, single buffered']
    #allocation3 [shape = 's32[1]{0}', space=sflag, size = 0x4, scoped, tag = 'scoped memory for mlp_forward.1']
    #allocation4 [shape = 's32[1]{0}', space=sflag, size = 0x4, scoped, tag = 'scoped memory for mlp_forward.1']
    #allocation5 [shape = 'u8[524288]{0}', space=vmem, size = 0x80000, scoped, tag = 'input window, operand 3, single buffered']
    #allocation6 [shape = 's32[1]{0}', space=sflag, size = 0x4, scoped, tag = 'scoped memory for mlp_forward.1']
    #allocation7 [shape = 'u8[4096]{0}', space=vmem, size = 0x1000, scoped, tag = 'output window, operand 0, single buffered']
    %12 = vsyncpa [#allocation3], 0
    %13 = vsyncpa [#allocation6], 0
    %14 = vsyncpa [#allocation4], 0
    // Predicated region
    $region2: #{mlp_forward.1} parent=1 // pred_check
      _
    $region3: #{mlp_forward.1} parent=1 // pred_check_branch
      %16 = sbr.rel (0) target = $region5
    $region4: #{mlp_forward.1} parent=1 // pred_region
      _
    $region5: #{mlp_forward.1} parent=1 // pred_fallthru
      _
    // Predicated region
    $region6: #{mlp_forward.1} parent=1 // pred_check
      _
    $region7: #{mlp_forward.1} parent=1 // pred_check_branch
      %18 = sbr.rel (0) target = $region9
    $region8: #{mlp_forward.1} parent=1 // pred_region
      %20 = vsyncadd [#allocation3], 0
      %s21 = sshll.u32 %s1, 4
      %s22 = int_to_ptr.hbm [resolvable:$true] %s21
      %s23 = sshll.u32 [#allocation2], 4
      %s24 = int_to_ptr.vmem [resolvable:$true] %s23
      %29 = dma.hbm_to_vmem [thread:$0]  %s22, 28672, %s24, [#allocation3], 256, 256, 16
    $region9: #{mlp_forward.1} parent=1 // pred_fallthru
      _
    // Predicated region
    $region10: #{mlp_forward.1} parent=1 // pred_check
      _
    $region11: #{mlp_forward.1} parent=1 // pred_check_branch
      %31 = sbr.rel (0) target = $region13
    $region12: #{mlp_forward.1} parent=1 // pred_region
      _
    $region13: #{mlp_forward.1} parent=1 // pred_fallthru
      _
    // Predicated region
    $region14: #{mlp_forward.1} parent=1 // pred_check
      _
    $region15: #{mlp_forward.1} parent=1 // pred_check_branch
      %33 = sbr.rel (0) target = $region17
    $region16: #{mlp_forward.1} parent=1 // pred_region
      %35 = vsyncadd [#allocation6], 0
      %s36 = sshll.u32 %s3, 4
      %s37 = int_to_ptr.hbm [resolvable:$true] %s36
      %s38 = sshll.u32 [#allocation5], 4
      %s39 = int_to_ptr.vmem [resolvable:$true] %s38
      %44 = dma.hbm_to_vmem [thread:$0]  %s37, 16384, %s39, [#allocation6], 256, 256, 16
    $region17: #{mlp_forward.1} parent=1 // pred_fallthru
      _
    // Predicated region
    $region18: #{mlp_forward.1} parent=1 // pred_check
      _
    $region19: #{mlp_forward.1} parent=1 // pred_check_branch
      %46 = sbr.rel (0) target = $region21
    $region20: #{mlp_forward.1} parent=1 // pred_region
      _
    $region21: #{mlp_forward.1} parent=1 // pred_fallthru
      _
    // Predicated region
    $region22: #{mlp_forward.1} parent=1 // pred_check
      _
    $region23: #{mlp_forward.1} parent=1 // pred_check_branch
      %48 = sbr.rel (0) target = $region25
    $region24: #{mlp_forward.1} parent=1 // pred_region
      _
    $region25: #{mlp_forward.1} parent=1 // pred_fallthru
      _
    // Predicated region
    $region26: #{mlp_forward.1} parent=1 // pred_check
      _
    $region27: #{mlp_forward.1} parent=1 // pred_check_branch
      %50 = sbr.rel (0) target = $region29
    $region28: #{mlp_forward.1} parent=1 // pred_region
      _
    $region29: #{mlp_forward.1} parent=1 // pred_fallthru
      _
    // Predicated region
    $region30: #{mlp_forward.1} parent=1 // pred_check
      _
    $region31: #{mlp_forward.1} parent=1 // pred_check_branch
      %52 = sbr.rel (0) target = $region33
    $region32: #{mlp_forward.1} parent=1 // pred_region
      %54 = dma.done [#allocation3], 28672
    $region33: #{mlp_forward.1} parent=1 // pred_fallthru
      _
    // Predicated region
    $region34: #{mlp_forward.1} parent=1 // pred_check
      _
    $region35: #{mlp_forward.1} parent=1 // pred_check_branch
      %56 = sbr.rel (0) target = $region37
    $region36: #{mlp_forward.1} parent=1 // pred_region
      %58 = dma.done [#allocation6], 16384
    $region37: #{mlp_forward.1} parent=1 // pred_fallthru
      _
    %v59 = vld [vmem:[#allocation2] sm:$0xff]
    %v60 = vld [vmem:[#allocation2 + $0x8] sm:$0xff]
    %v61 = vld [vmem:[#allocation2 + $0x10] sm:$0xff]
    %v62 = vld [vmem:[#allocation2 + $0x18] sm:$0xff]
    %v63 = vld [vmem:[#allocation2 + $0x20] sm:$0xff]
    %v64 = vld [vmem:[#allocation2 + $0x28] sm:$0xff]
    %v65 = vld [vmem:[#allocation2 + $0x30] sm:$0xff]
    %v66 = vld [vmem:[#allocation2 + $0x38] sm:$0xff]
    %v67 = vld [vmem:[#allocation2 + $0x40] sm:$0xff]
    %v68 = vld [vmem:[#allocation2 + $0x48] sm:$0xff]
    %v69 = vld [vmem:[#allocation2 + $0x50] sm:$0xff]
    %v70 = vld [vmem:[#allocation2 + $0x58] sm:$0xff]
    %v71 = vld [vmem:[#allocation2 + $0x60] sm:$0xff]
    %v72 = vld [vmem:[#allocation2 + $0x68] sm:$0xff]
    %v73 = vld [vmem:[#allocation2 + $0x70] sm:$0xff]
    %v74 = vld [vmem:[#allocation2 + $0x78] sm:$0xff]
    %v75 = vld [vmem:[#allocation2 + $0x80] sm:$0xff]
    %v76 = vld [vmem:[#allocation2 + $0x88] sm:$0xff]
    %v77 = vld [vmem:[#allocation2 + $0x90] sm:$0xff]
    %v78 = vld [vmem:[#allocation2 + $0x98] sm:$0xff]
    %v79 = vld [vmem:[#allocation2 + $0xa0] sm:$0xff]
    %v80 = vld [vmem:[#allocation2 + $0xa8] sm:$0xff]
    %v81 = vld [vmem:[#allocation2 + $0xb0] sm:$0xff]
    %v82 = vld [vmem:[#allocation2 + $0xb8] sm:$0xff]
    %v83 = vld [vmem:[#allocation2 + $0xc0] sm:$0xff]
    %v84 = vld [vmem:[#allocation2 + $0xc8] sm:$0xff]
    %v85 = vld [vmem:[#allocation2 + $0xd0] sm:$0xff]
    %v86 = vld [vmem:[#allocation2 + $0xd8] sm:$0xff]
    %v87 = vld [vmem:[#allocation2 + $0xe0] sm:$0xff]
    %v88 = vld [vmem:[#allocation2 + $0xe8] sm:$0xff]
    %v89 = vld [vmem:[#allocation2 + $0xf0] sm:$0xff]
    %v90 = vld [vmem:[#allocation2 + $0xf8] sm:$0xff]
    %v91 = vld [vmem:[#allocation2 + $0x100] sm:$0xff]
    %v92 = vld [vmem:[#allocation2 + $0x108] sm:$0xff]
    %v93 = vld [vmem:[#allocation2 + $0x110] sm:$0xff]
    %v94 = vld [vmem:[#allocation2 + $0x118] sm:$0xff]
    %v95 = vld [vmem:[#allocation2 + $0x120] sm:$0xff]
    %v96 = vld [vmem:[#allocation2 + $0x128] sm:$0xff]
    %v97 = vld [vmem:[#allocation2 + $0x130] sm:$0xff]
    %v98 = vld [vmem:[#allocation2 + $0x138] sm:$0xff]
    %v99 = vld [vmem:[#allocation2 + $0x140] sm:$0xff]
    %v100 = vld [vmem:[#allocation2 + $0x148] sm:$0xff]
    %v101 = vld [vmem:[#allocation2 + $0x150] sm:$0xff]
    %v102 = vld [vmem:[#allocation2 + $0x158] sm:$0xff]
    %v103 = vld [vmem:[#allocation2 + $0x160] sm:$0xff]
    %v104 = vld [vmem:[#allocation2 + $0x168] sm:$0xff]
    %v105 = vld [vmem:[#allocation2 + $0x170] sm:$0xff]
    %v106 = vld [vmem:[#allocation2 + $0x178] sm:$0xff]
    %v107 = vld [vmem:[#allocation2 + $0x180] sm:$0xff]
    %v108 = vld [vmem:[#allocation2 + $0x188] sm:$0xff]
    %v109 = vld [vmem:[#allocation2 + $0x190] sm:$0xff]
    %v110 = vld [vmem:[#allocation2 + $0x198] sm:$0xff]
    %v111 = vld [vmem:[#allocation2 + $0x1a0] sm:$0xff]
    %v112 = vld [vmem:[#allocation2 + $0x1a8] sm:$0xff]
    %v113 = vld [vmem:[#allocation2 + $0x1b0] sm:$0xff]
    %v114 = vld [vmem:[#allocation2 + $0x1b8] sm:$0xff]
    %v115 = vld [vmem:[#allocation2 + $0x1c0] sm:$0xff]
    %v116 = vld [vmem:[#allocation2 + $0x1c8] sm:$0xff]
    %v117 = vld [vmem:[#allocation2 + $0x1d0] sm:$0xff]
    %v118 = vld [vmem:[#allocation2 + $0x1d8] sm:$0xff]
    %v119 = vld [vmem:[#allocation2 + $0x1e0] sm:$0xff]
    %v120 = vld [vmem:[#allocation2 + $0x1e8] sm:$0xff]
    %v121 = vld [vmem:[#allocation2 + $0x1f0] sm:$0xff]
    %v122 = vld [vmem:[#allocation2 + $0x1f8] sm:$0xff]
    %v123 = vld [vmem:[#allocation2 + $0x200] sm:$0xff]
    %v124 = vld [vmem:[#allocation2 + $0x208] sm:$0xff]
    %v125 = vld [vmem:[#allocation2 + $0x210] sm:$0xff]
    %v126 = vld [vmem:[#allocation2 + $0x218] sm:$0xff]
    %v127 = vld [vmem:[#allocation2 + $0x220] sm:$0xff]
    %v128 = vld [vmem:[#allocation2 + $0x228] sm:$0xff]
    %v129 = vld [vmem:[#allocation2 + $0x230] sm:$0xff]
    %v130 = vld [vmem:[#allocation2 + $0x238] sm:$0xff]
    %v131 = vld [vmem:[#allocation2 + $0x240] sm:$0xff]
    %v132 = vld [vmem:[#allocation2 + $0x248] sm:$0xff]
    %v133 = vld [vmem:[#allocation2 + $0x250] sm:$0xff]
    %v134 = vld [vmem:[#allocation2 + $0x258] sm:$0xff]
    %v135 = vld [vmem:[#allocation2 + $0x260] sm:$0xff]
    %v136 = vld [vmem:[#allocation2 + $0x268] sm:$0xff]
    %v137 = vld [vmem:[#allocation2 + $0x270] sm:$0xff]
    %v138 = vld [vmem:[#allocation2 + $0x278] sm:$0xff]
    %v139 = vld [vmem:[#allocation2 + $0x280] sm:$0xff]
    %v140 = vld [vmem:[#allocation2 + $0x288] sm:$0xff]
    %v141 = vld [vmem:[#allocation2 + $0x290] sm:$0xff]
    %v142 = vld [vmem:[#allocation2 + $0x298] sm:$0xff]
    %v143 = vld [vmem:[#allocation2 + $0x2a0] sm:$0xff]
    %v144 = vld [vmem:[#allocation2 + $0x2a8] sm:$0xff]
    %v145 = vld [vmem:[#allocation2 + $0x2b0] sm:$0xff]
    %v146 = vld [vmem:[#allocation2 + $0x2b8] sm:$0xff]
    %v147 = vld [vmem:[#allocation2 + $0x2c0] sm:$0xff]
    %v148 = vld [vmem:[#allocation2 + $0x2c8] sm:$0xff]
    %v149 = vld [vmem:[#allocation2 + $0x2d0] sm:$0xff]
    %v150 = vld [vmem:[#allocation2 + $0x2d8] sm:$0xff]
    %v151 = vld [vmem:[#allocation2 + $0x2e0] sm:$0xff]
    %v152 = vld [vmem:[#allocation2 + $0x2e8] sm:$0xff]
    %v153 = vld [vmem:[#allocation2 + $0x2f0] sm:$0xff]
    %v154 = vld [vmem:[#allocation2 + $0x2f8] sm:$0xff]
    %v155 = vld [vmem:[#allocation2 + $0x300] sm:$0xff]
    %v156 = vld [vmem:[#allocation2 + $0x308] sm:$0xff]
    %v157 = vld [vmem:[#allocation2 + $0x310] sm:$0xff]
    %v158 = vld [vmem:[#allocation2 + $0x318] sm:$0xff]
    %v159 = vld [vmem:[#allocation2 + $0x320] sm:$0xff]
    %v160 = vld [vmem:[#allocation2 + $0x328] sm:$0xff]
    %v161 = vld [vmem:[#allocation2 + $0x330] sm:$0xff]
    %v162 = vld [vmem:[#allocation2 + $0x338] sm:$0xff]
    %v163 = vld [vmem:[#allocation2 + $0x340] sm:$0xff]
    %v164 = vld [vmem:[#allocation2 + $0x348] sm:$0xff]
    %v165 = vld [vmem:[#allocation2 + $0x350] sm:$0xff]
    %v166 = vld [vmem:[#allocation2 + $0x358] sm:$0xff]
    %v167 = vld [vmem:[#allocation2 + $0x360] sm:$0xff]
    %v168 = vld [vmem:[#allocation2 + $0x368] sm:$0xff]
    %v169 = vld [vmem:[#allocation2 + $0x370] sm:$0xff]
    %v170 = vld [vmem:[#allocation2 + $0x378] sm:$0xff]
    %v171 = vld [vmem:[#allocation2 + $0x380] sm:$0xff]
    %v172 = vld [vmem:[#allocation2 + $0x388] sm:$0xff]
    %v173 = vld [vmem:[#allocation2 + $0x390] sm:$0xff]
    %v174 = vld [vmem:[#allocation2 + $0x398] sm:$0xff]
    %v175 = vld [vmem:[#allocation2 + $0x3a0] sm:$0xff]
    %v176 = vld [vmem:[#allocation2 + $0x3a8] sm:$0xff]
    %v177 = vld [vmem:[#allocation2 + $0x3b0] sm:$0xff]
    %v178 = vld [vmem:[#allocation2 + $0x3b8] sm:$0xff]
    %v179 = vld [vmem:[#allocation2 + $0x3c0] sm:$0xff]
    %v180 = vld [vmem:[#allocation2 + $0x3c8] sm:$0xff]
    %v181 = vld [vmem:[#allocation2 + $0x3d0] sm:$0xff]
    %v182 = vld [vmem:[#allocation2 + $0x3d8] sm:$0xff]
    %v183 = vld [vmem:[#allocation2 + $0x3e0] sm:$0xff]
    %v184 = vld [vmem:[#allocation2 + $0x3e8] sm:$0xff]
    %v185 = vld [vmem:[#allocation2 + $0x3f0] sm:$0xff]
    %v186 = vld [vmem:[#allocation2 + $0x3f8] sm:$0xff]
    %v187 = vld [vmem:[#allocation2 + $0x400] sm:$0xff]
    %v188 = vld [vmem:[#allocation2 + $0x408] sm:$0xff]
    %v189 = vld [vmem:[#allocation2 + $0x410] sm:$0xff]
    %v190 = vld [vmem:[#allocation2 + $0x418] sm:$0xff]
    %v191 = vld [vmem:[#allocation2 + $0x420] sm:$0xff]
    %v192 = vld [vmem:[#allocation2 + $0x428] sm:$0xff]
    %v193 = vld [vmem:[#allocation2 + $0x430] sm:$0xff]
    %v194 = vld [vmem:[#allocation2 + $0x438] sm:$0xff]
    %v195 = vld [vmem:[#allocation2 + $0x440] sm:$0xff]
    %v196 = vld [vmem:[#allocation2 + $0x448] sm:$0xff]
    %v197 = vld [vmem:[#allocation2 + $0x450] sm:$0xff]
    %v198 = vld [vmem:[#allocation2 + $0x458] sm:$0xff]
    %v199 = vld [vmem:[#allocation2 + $0x460] sm:$0xff]
    %v200 = vld [vmem:[#allocation2 + $0x468] sm:$0xff]
    %v201 = vld [vmem:[#allocation2 + $0x470] sm:$0xff]
    %v202 = vld [vmem:[#allocation2 + $0x478] sm:$0xff]
    %v203 = vld [vmem:[#allocation2 + $0x480] sm:$0xff]
    %v204 = vld [vmem:[#allocation2 + $0x488] sm:$0xff]
    %v205 = vld [vmem:[#allocation2 + $0x490] sm:$0xff]
    %v206 = vld [vmem:[#allocation2 + $0x498] sm:$0xff]
    %v207 = vld [vmem:[#allocation2 + $0x4a0] sm:$0xff]
    %v208 = vld [vmem:[#allocation2 + $0x4a8] sm:$0xff]
    %v209 = vld [vmem:[#allocation2 + $0x4b0] sm:$0xff]
    %v210 = vld [vmem:[#allocation2 + $0x4b8] sm:$0xff]
    %v211 = vld [vmem:[#allocation2 + $0x4c0] sm:$0xff]
    %v212 = vld [vmem:[#allocation2 + $0x4c8] sm:$0xff]
    %v213 = vld [vmem:[#allocation2 + $0x4d0] sm:$0xff]
    %v214 = vld [vmem:[#allocation2 + $0x4d8] sm:$0xff]
    %v215 = vld [vmem:[#allocation2 + $0x4e0] sm:$0xff]
    %v216 = vld [vmem:[#allocation2 + $0x4e8] sm:$0xff]
    %v217 = vld [vmem:[#allocation2 + $0x4f0] sm:$0xff]
    %v218 = vld [vmem:[#allocation2 + $0x4f8] sm:$0xff]
    %v219 = vld [vmem:[#allocation2 + $0x500] sm:$0xff]
    %v220 = vld [vmem:[#allocation2 + $0x508] sm:$0xff]
    %v221 = vld [vmem:[#allocation2 + $0x510] sm:$0xff]
    %v222 = vld [vmem:[#allocation2 + $0x518] sm:$0xff]
    %v223 = vld [vmem:[#allocation2 + $0x520] sm:$0xff]
    %v224 = vld [vmem:[#allocation2 + $0x528] sm:$0xff]
    %v225 = vld [vmem:[#allocation2 + $0x530] sm:$0xff]
    %v226 = vld [vmem:[#allocation2 + $0x538] sm:$0xff]
    %v227 = vld [vmem:[#allocation2 + $0x540] sm:$0xff]
    %v228 = vld [vmem:[#allocation2 + $0x548] sm:$0xff]
    %v229 = vld [vmem:[#allocation2 + $0x550] sm:$0xff]
    %v230 = vld [vmem:[#allocation2 + $0x558] sm:$0xff]
    %v231 = vld [vmem:[#allocation2 + $0x560] sm:$0xff]
    %v232 = vld [vmem:[#allocation2 + $0x568] sm:$0xff]
    %v233 = vld [vmem:[#allocation2 + $0x570] sm:$0xff]
    %v234 = vld [vmem:[#allocation2 + $0x578] sm:$0xff]
    %v235 = vld [vmem:[#allocation2 + $0x580] sm:$0xff]
    %v236 = vld [vmem:[#allocation2 + $0x588] sm:$0xff]
    %v237 = vld [vmem:[#allocation2 + $0x590] sm:$0xff]
    %v238 = vld [vmem:[#allocation2 + $0x598] sm:$0xff]
    %v239 = vld [vmem:[#allocation2 + $0x5a0] sm:$0xff]
    %v240 = vld [vmem:[#allocation2 + $0x5a8] sm:$0xff]
    %v241 = vld [vmem:[#allocation2 + $0x5b0] sm:$0xff]
    %v242 = vld [vmem:[#allocation2 + $0x5b8] sm:$0xff]
    %v243 = vld [vmem:[#allocation2 + $0x5c0] sm:$0xff]
    %v244 = vld [vmem:[#allocation2 + $0x5c8] sm:$0xff]
    %v245 = vld [vmem:[#allocation2 + $0x5d0] sm:$0xff]
    %v246 = vld [vmem:[#allocation2 + $0x5d8] sm:$0xff]
    %v247 = vld [vmem:[#allocation2 + $0x5e0] sm:$0xff]
    %v248 = vld [vmem:[#allocation2 + $0x5e8] sm:$0xff]
    %v249 = vld [vmem:[#allocation2 + $0x5f0] sm:$0xff]
    %v250 = vld [vmem:[#allocation2 + $0x5f8] sm:$0xff]
    %v251 = vld [vmem:[#allocation2 + $0x600] sm:$0xff]
    %v252 = vld [vmem:[#allocation2 + $0x608] sm:$0xff]
    %v253 = vld [vmem:[#allocation2 + $0x610] sm:$0xff]
    %v254 = vld [vmem:[#allocation2 + $0x618] sm:$0xff]
    %v255 = vld [vmem:[#allocation2 + $0x620] sm:$0xff]
    %v256 = vld [vmem:[#allocation2 + $0x628] sm:$0xff]
    %v257 = vld [vmem:[#allocation2 + $0x630] sm:$0xff]
    %v258 = vld [vmem:[#allocation2 + $0x638] sm:$0xff]
    %v259 = vld [vmem:[#allocation2 + $0x640] sm:$0xff]
    %v260 = vld [vmem:[#allocation2 + $0x648] sm:$0xff]
    %v261 = vld [vmem:[#allocation2 + $0x650] sm:$0xff]
    %v262 = vld [vmem:[#allocation2 + $0x658] sm:$0xff]
    %v263 = vld [vmem:[#allocation2 + $0x660] sm:$0xff]
    %v264 = vld [vmem:[#allocation2 + $0x668] sm:$0xff]
    %v265 = vld [vmem:[#allocation2 + $0x670] sm:$0xff]
    %v266 = vld [vmem:[#allocation2 + $0x678] sm:$0xff]
    %v267 = vld [vmem:[#allocation2 + $0x680] sm:$0xff]
    %v268 = vld [vmem:[#allocation2 + $0x688] sm:$0xff]
    %v269 = vld [vmem:[#allocation2 + $0x690] sm:$0xff]
    %v270 = vld [vmem:[#allocation2 + $0x698] sm:$0xff]
    %v271 = vld [vmem:[#allocation2 + $0x6a0] sm:$0xff]
    %v272 = vld [vmem:[#allocation2 + $0x6a8] sm:$0xff]
    %v273 = vld [vmem:[#allocation2 + $0x6b0] sm:$0xff]
    %v274 = vld [vmem:[#allocation2 + $0x6b8] sm:$0xff]
    %v275 = vld [vmem:[#allocation2 + $0x6c0] sm:$0xff]
    %v276 = vld [vmem:[#allocation2 + $0x6c8] sm:$0xff]
    %v277 = vld [vmem:[#allocation2 + $0x6d0] sm:$0xff]
    %v278 = vld [vmem:[#allocation2 + $0x6d8] sm:$0xff]
    %v279 = vld [vmem:[#allocation2 + $0x6e0] sm:$0xff]
    %v280 = vld [vmem:[#allocation2 + $0x6e8] sm:$0xff]
    %v281 = vld [vmem:[#allocation2 + $0x6f0] sm:$0xff]
    %v282 = vld [vmem:[#allocation2 + $0x6f8] sm:$0xff]
    %v283 = vld [vmem:[#allocation5] sm:$0xff]
    %v284 = vld [vmem:[#allocation5 + $0x8] sm:$0xff]
    %v285 = vld [vmem:[#allocation5 + $0x10] sm:$0xff]
    %v286 = vld [vmem:[#allocation5 + $0x18] sm:$0xff]
    %v287 = vld [vmem:[#allocation5 + $0x20] sm:$0xff]
    %v288 = vld [vmem:[#allocation5 + $0x28] sm:$0xff]
    %v289 = vld [vmem:[#allocation5 + $0x30] sm:$0xff]
    %v290 = vld [vmem:[#allocation5 + $0x38] sm:$0xff]
    %v291 = vld [vmem:[#allocation5 + $0x40] sm:$0xff]
    %v292 = vld [vmem:[#allocation5 + $0x48] sm:$0xff]
    %v293 = vld [vmem:[#allocation5 + $0x50] sm:$0xff]
    %v294 = vld [vmem:[#allocation5 + $0x58] sm:$0xff]
    %v295 = vld [vmem:[#allocation5 + $0x60] sm:$0xff]
    %v296 = vld [vmem:[#allocation5 + $0x68] sm:$0xff]
    %v297 = vld [vmem:[#allocation5 + $0x70] sm:$0xff]
    %v298 = vld [vmem:[#allocation5 + $0x78] sm:$0xff]
    %v299 = vld [vmem:[#allocation5 + $0x80] sm:$0xff]
    %v300 = vld [vmem:[#allocation5 + $0x88] sm:$0xff]
    %v301 = vld [vmem:[#allocation5 + $0x90] sm:$0xff]
    %v302 = vld [vmem:[#allocation5 + $0x98] sm:$0xff]
    %v303 = vld [vmem:[#allocation5 + $0xa0] sm:$0xff]
    %v304 = vld [vmem:[#allocation5 + $0xa8] sm:$0xff]
    %v305 = vld [vmem:[#allocation5 + $0xb0] sm:$0xff]
    %v306 = vld [vmem:[#allocation5 + $0xb8] sm:$0xff]
    %v307 = vld [vmem:[#allocation5 + $0xc0] sm:$0xff]
    %v308 = vld [vmem:[#allocation5 + $0xc8] sm:$0xff]
    %v309 = vld [vmem:[#allocation5 + $0xd0] sm:$0xff]
    %v310 = vld [vmem:[#allocation5 + $0xd8] sm:$0xff]
    %v311 = vld [vmem:[#allocation5 + $0xe0] sm:$0xff]
    %v312 = vld [vmem:[#allocation5 + $0xe8] sm:$0xff]
    %v313 = vld [vmem:[#allocation5 + $0xf0] sm:$0xff]
    %v314 = vld [vmem:[#allocation5 + $0xf8] sm:$0xff]
    %v315 = vld [vmem:[#allocation5 + $0x100] sm:$0xff]
    %v316 = vld [vmem:[#allocation5 + $0x108] sm:$0xff]
    %v317 = vld [vmem:[#allocation5 + $0x110] sm:$0xff]
    %v318 = vld [vmem:[#allocation5 + $0x118] sm:$0xff]
    %v319 = vld [vmem:[#allocation5 + $0x120] sm:$0xff]
    %v320 = vld [vmem:[#allocation5 + $0x128] sm:$0xff]
    %v321 = vld [vmem:[#allocation5 + $0x130] sm:$0xff]
    %v322 = vld [vmem:[#allocation5 + $0x138] sm:$0xff]
    %v323 = vld [vmem:[#allocation5 + $0x140] sm:$0xff]
    %v324 = vld [vmem:[#allocation5 + $0x148] sm:$0xff]
    %v325 = vld [vmem:[#allocation5 + $0x150] sm:$0xff]
    %v326 = vld [vmem:[#allocation5 + $0x158] sm:$0xff]
    %v327 = vld [vmem:[#allocation5 + $0x160] sm:$0xff]
    %v328 = vld [vmem:[#allocation5 + $0x168] sm:$0xff]
    %v329 = vld [vmem:[#allocation5 + $0x170] sm:$0xff]
    %v330 = vld [vmem:[#allocation5 + $0x178] sm:$0xff]
    %v331 = vld [vmem:[#allocation5 + $0x180] sm:$0xff]
    %v332 = vld [vmem:[#allocation5 + $0x188] sm:$0xff]
    %v333 = vld [vmem:[#allocation5 + $0x190] sm:$0xff]
    %v334 = vld [vmem:[#allocation5 + $0x198] sm:$0xff]
    %v335 = vld [vmem:[#allocation5 + $0x1a0] sm:$0xff]
    %v336 = vld [vmem:[#allocation5 + $0x1a8] sm:$0xff]
    %v337 = vld [vmem:[#allocation5 + $0x1b0] sm:$0xff]
    %v338 = vld [vmem:[#allocation5 + $0x1b8] sm:$0xff]
    %v339 = vld [vmem:[#allocation5 + $0x1c0] sm:$0xff]
    %v340 = vld [vmem:[#allocation5 + $0x1c8] sm:$0xff]
    %v341 = vld [vmem:[#allocation5 + $0x1d0] sm:$0xff]
    %v342 = vld [vmem:[#allocation5 + $0x1d8] sm:$0xff]
    %v343 = vld [vmem:[#allocation5 + $0x1e0] sm:$0xff]
    %v344 = vld [vmem:[#allocation5 + $0x1e8] sm:$0xff]
    %v345 = vld [vmem:[#allocation5 + $0x1f0] sm:$0xff]
    %v346 = vld [vmem:[#allocation5 + $0x1f8] sm:$0xff]
    %v347 = vld [vmem:[#allocation5 + $0x200] sm:$0xff]
    %v348 = vld [vmem:[#allocation5 + $0x208] sm:$0xff]
    %v349 = vld [vmem:[#allocation5 + $0x210] sm:$0xff]
    %v350 = vld [vmem:[#allocation5 + $0x218] sm:$0xff]
    %v351 = vld [vmem:[#allocation5 + $0x220] sm:$0xff]
    %v352 = vld [vmem:[#allocation5 + $0x228] sm:$0xff]
    %v353 = vld [vmem:[#allocation5 + $0x230] sm:$0xff]
    %v354 = vld [vmem:[#allocation5 + $0x238] sm:$0xff]
    %v355 = vld [vmem:[#allocation5 + $0x240] sm:$0xff]
    %v356 = vld [vmem:[#allocation5 + $0x248] sm:$0xff]
    %v357 = vld [vmem:[#allocation5 + $0x250] sm:$0xff]
    %v358 = vld [vmem:[#allocation5 + $0x258] sm:$0xff]
    %v359 = vld [vmem:[#allocation5 + $0x260] sm:$0xff]
    %v360 = vld [vmem:[#allocation5 + $0x268] sm:$0xff]
    %v361 = vld [vmem:[#allocation5 + $0x270] sm:$0xff]
    %v362 = vld [vmem:[#allocation5 + $0x278] sm:$0xff]
    %v363 = vld [vmem:[#allocation5 + $0x280] sm:$0xff]
    %v364 = vld [vmem:[#allocation5 + $0x288] sm:$0xff]
    %v365 = vld [vmem:[#allocation5 + $0x290] sm:$0xff]
    %v366 = vld [vmem:[#allocation5 + $0x298] sm:$0xff]
    %v367 = vld [vmem:[#allocation5 + $0x2a0] sm:$0xff]
    %v368 = vld [vmem:[#allocation5 + $0x2a8] sm:$0xff]
    %v369 = vld [vmem:[#allocation5 + $0x2b0] sm:$0xff]
    %v370 = vld [vmem:[#allocation5 + $0x2b8] sm:$0xff]
    %v371 = vld [vmem:[#allocation5 + $0x2c0] sm:$0xff]
    %v372 = vld [vmem:[#allocation5 + $0x2c8] sm:$0xff]
    %v373 = vld [vmem:[#allocation5 + $0x2d0] sm:$0xff]
    %v374 = vld [vmem:[#allocation5 + $0x2d8] sm:$0xff]
    %v375 = vld [vmem:[#allocation5 + $0x2e0] sm:$0xff]
    %v376 = vld [vmem:[#allocation5 + $0x2e8] sm:$0xff]
    %v377 = vld [vmem:[#allocation5 + $0x2f0] sm:$0xff]
    %v378 = vld [vmem:[#allocation5 + $0x2f8] sm:$0xff]
    %v379 = vld [vmem:[#allocation5 + $0x300] sm:$0xff]
    %v380 = vld [vmem:[#allocation5 + $0x308] sm:$0xff]
    %v381 = vld [vmem:[#allocation5 + $0x310] sm:$0xff]
    %v382 = vld [vmem:[#allocation5 + $0x318] sm:$0xff]
    %v383 = vld [vmem:[#allocation5 + $0x320] sm:$0xff]
    %v384 = vld [vmem:[#allocation5 + $0x328] sm:$0xff]
    %v385 = vld [vmem:[#allocation5 + $0x330] sm:$0xff]
    %v386 = vld [vmem:[#allocation5 + $0x338] sm:$0xff]
    %v387 = vld [vmem:[#allocation5 + $0x340] sm:$0xff]
    %v388 = vld [vmem:[#allocation5 + $0x348] sm:$0xff]
    %v389 = vld [vmem:[#allocation5 + $0x350] sm:$0xff]
    %v390 = vld [vmem:[#allocation5 + $0x358] sm:$0xff]
    %v391 = vld [vmem:[#allocation5 + $0x360] sm:$0xff]
    %v392 = vld [vmem:[#allocation5 + $0x368] sm:$0xff]
    %v393 = vld [vmem:[#allocation5 + $0x370] sm:$0xff]
    %v394 = vld [vmem:[#allocation5 + $0x378] sm:$0xff]
    %v395 = vld [vmem:[#allocation5 + $0x380] sm:$0xff]
    %v396 = vld [vmem:[#allocation5 + $0x388] sm:$0xff]
    %v397 = vld [vmem:[#allocation5 + $0x390] sm:$0xff]
    %v398 = vld [vmem:[#allocation5 + $0x398] sm:$0xff]
    %v399 = vld [vmem:[#allocation5 + $0x3a0] sm:$0xff]
    %v400 = vld [vmem:[#allocation5 + $0x3a8] sm:$0xff]
    %v401 = vld [vmem:[#allocation5 + $0x3b0] sm:$0xff]
    %v402 = vld [vmem:[#allocation5 + $0x3b8] sm:$0xff]
    %v403 = vld [vmem:[#allocation5 + $0x3c0] sm:$0xff]
    %v404 = vld [vmem:[#allocation5 + $0x3c8] sm:$0xff]
    %v405 = vld [vmem:[#allocation5 + $0x3d0] sm:$0xff]
    %v406 = vld [vmem:[#allocation5 + $0x3d8] sm:$0xff]
    %v407 = vld [vmem:[#allocation5 + $0x3e0] sm:$0xff]
    %v408 = vld [vmem:[#allocation5 + $0x3e8] sm:$0xff]
    %v409 = vld [vmem:[#allocation5 + $0x3f0] sm:$0xff]
    %v410 = vld [vmem:[#allocation5 + $0x3f8] sm:$0xff]
    %v411 = vld [vmem:[%s5] sm:$0xf]
    %v412 = vld [vmem:[%s5 + $0x4] sm:$0xf]
    %v413 = vld [vmem:[%s5 + $0x8] sm:$0xf]
    %v414 = vld [vmem:[%s5 + $0xc] sm:$0xf]
    %v415 = vld [vmem:[%s5 + $0x10] sm:$0xf]
    %v416 = vld [vmem:[%s5 + $0x14] sm:$0xf]
    %v417 = vld [vmem:[%s5 + $0x18] sm:$0xf]
    %v418 = vld [vmem:[%s5 + $0x1c] sm:$0xf]
    %v419 = vld [vmem:[%s5 + $0x20] sm:$0xf]
    %v420 = vld [vmem:[%s5 + $0x24] sm:$0xf]
    %v421 = vld [vmem:[%s5 + $0x28] sm:$0xf]
    %v422 = vld [vmem:[%s5 + $0x2c] sm:$0xf]
    %v423 = vld [vmem:[%s5 + $0x30] sm:$0xf]
    %v424 = vld [vmem:[%s5 + $0x34] sm:$0xf]
    %v425 = vld [vmem:[%s5 + $0x38] sm:$0xf]
    %v426 = vld [vmem:[%s5 + $0x3c] sm:$0xf]
    %v427 = vld [vmem:[%s5 + $0x40] sm:$0xf]
    %v428 = vld [vmem:[%s5 + $0x44] sm:$0xf]
    %v429 = vld [vmem:[%s5 + $0x48] sm:$0xf]
    %v430 = vld [vmem:[%s5 + $0x4c] sm:$0xf]
    %v431 = vld [vmem:[%s5 + $0x50] sm:$0xf]
    %v432 = vld [vmem:[%s5 + $0x54] sm:$0xf]
    %v433 = vld [vmem:[%s5 + $0x58] sm:$0xf]
    %v434 = vld [vmem:[%s5 + $0x5c] sm:$0xf]
    %v435 = vld [vmem:[%s5 + $0x60] sm:$0xf]
    %v436 = vld [vmem:[%s5 + $0x64] sm:$0xf]
    %v437 = vld [vmem:[%s5 + $0x68] sm:$0xf]
    %v438 = vld [vmem:[%s5 + $0x6c] sm:$0xf]
    %v439 = vld [vmem:[%s5 + $0x70] sm:$0xf]
    %v440 = vld [vmem:[%s5 + $0x74] sm:$0xf]
    %v441 = vld [vmem:[%s5 + $0x78] sm:$0xf]
    %v442 = vld [vmem:[%s5 + $0x7c] sm:$0xf]
    %v443 = vld [vmem:[%s5 + $0x80] sm:$0xf]
    %v444 = vld [vmem:[%s5 + $0x84] sm:$0xf]
    %v445 = vld [vmem:[%s5 + $0x88] sm:$0xf]
    %v446 = vld [vmem:[%s5 + $0x8c] sm:$0xf]
    %v447 = vld [vmem:[%s5 + $0x90] sm:$0xf]
    %v448 = vld [vmem:[%s5 + $0x94] sm:$0xf]
    %v449 = vld [vmem:[%s5 + $0x98] sm:$0xf]
    %v450 = vld [vmem:[%s5 + $0x9c] sm:$0xf]
    %v451 = vld [vmem:[%s5 + $0xa0] sm:$0xf]
    %v452 = vld [vmem:[%s5 + $0xa4] sm:$0xf]
    %v453 = vld [vmem:[%s5 + $0xa8] sm:$0xf]
    %v454 = vld [vmem:[%s5 + $0xac] sm:$0xf]
    %v455 = vld [vmem:[%s5 + $0xb0] sm:$0xf]
    %v456 = vld [vmem:[%s5 + $0xb4] sm:$0xf]
    %v457 = vld [vmem:[%s5 + $0xb8] sm:$0xf]
    %v458 = vld [vmem:[%s5 + $0xbc] sm:$0xf]
    %v459 = vld [vmem:[%s5 + $0xc0] sm:$0xf]
    %v460 = vld [vmem:[%s5 + $0xc4] sm:$0xf]
    %v461 = vld [vmem:[%s5 + $0xc8] sm:$0xf]
    %v462 = vld [vmem:[%s5 + $0xcc] sm:$0xf]
    %v463 = vld [vmem:[%s5 + $0xd0] sm:$0xf]
    %v464 = vld [vmem:[%s5 + $0xd4] sm:$0xf]
    %v465 = vld [vmem:[%s5 + $0xd8] sm:$0xf]
    %v466 = vld [vmem:[%s5 + $0xdc] sm:$0xf]
    %v467 = vld [vmem:[%s5 + $0xe0] sm:$0xf]
    %v468 = vld [vmem:[%s5 + $0xe4] sm:$0xf]
    %v469 = vld [vmem:[%s5 + $0xe8] sm:$0xf]
    %v470 = vld [vmem:[%s5 + $0xec] sm:$0xf]
    %v471 = vld [vmem:[%s5 + $0xf0] sm:$0xf]
    %v472 = vld [vmem:[%s5 + $0xf4] sm:$0xf]
    %v473 = vld [vmem:[%s5 + $0xf8] sm:$0xf]
    %v474 = vld [vmem:[%s5 + $0xfc] sm:$0xf]
    %v475 = vld [vmem:[%s2] sm:$0xf]
    %v477 = vperm.slane %v475, 0
    %v478 = vperm.slane %v475, 1
    %v479 = vperm.slane %v475, 2
    %v480 = vperm.slane %v475, 3
    %v485 = vld [vmem:[%s4] sm:$0xf]
    %v487 = vperm.slane %v485, 0
    %v488 = vperm.slane %v485, 1
    %v489 = vperm.slane %v485, 2
    %v490 = vperm.slane %v485, 3
    %v495 = vld [vmem:[%s6] sm:$0x1]
    %v497 = vperm.slane %v495, 0
    %s499 = smul.u32 0, 7
    %s500 = smul.addr %s499, 4
    %s501 = scalar_lea.vmem %s0, %s500
    %v502 = vld [vmem:[%s501] sm:$0xff]
    %v503 = vld [vmem:[%s501 + $0x8] sm:$0xff]
    %v504 = vld [vmem:[%s501 + $0x10] sm:$0xff]
    %v505 = vld [vmem:[%s501 + $0x18] sm:$0xf]
    %v510 = vunpack.c.l.b16 %v502
    %v511 = vunpack.c.h.b16 %v502
    %v512 = vunpack.c.l.b16 %v503
    %v513 = vunpack.c.h.b16 %v503
    %v514 = vunpack.c.l.b16 %v504
    %v515 = vunpack.c.h.b16 %v504
    %v516 = vunpack.c.l.b16 %v505
    %v517 = vpack.c.b16 %v510, %v510
    %v518 = vpack.c.b16 %v511, %v511
    %v519 = vpack.c.b16 %v512, %v512
    %v520 = vpack.c.b16 %v513, %v513
    %v521 = vpack.c.b16 %v514, %v514
    %v522 = vpack.c.b16 %v515, %v515
    %v523 = vpack.c.b16 %v516, %v516
    %v755 = vunpack.c.l.b16 %v59
    %v756 = vunpack.c.h.b16 %v59
    %v757 = vunpack.c.l.b16 %v60
    %v758 = vunpack.c.h.b16 %v60
    %v759 = vunpack.c.l.b16 %v61
    %v760 = vunpack.c.h.b16 %v61
    %v761 = vunpack.c.l.b16 %v62
    %v762 = vunpack.c.h.b16 %v62
    %v763 = vunpack.c.l.b16 %v63
    %v764 = vunpack.c.h.b16 %v63
    %v765 = vunpack.c.l.b16 %v64
    %v766 = vunpack.c.h.b16 %v64
    %v767 = vunpack.c.l.b16 %v65
    %v768 = vunpack.c.h.b16 %v65
    %v769 = vunpack.c.l.b16 %v66
    %v770 = vunpack.c.h.b16 %v66
    %v771 = vunpack.c.l.b16 %v67
    %v772 = vunpack.c.h.b16 %v67
    %v773 = vunpack.c.l.b16 %v68
    %v774 = vunpack.c.h.b16 %v68
    %v775 = vunpack.c.l.b16 %v69
    %v776 = vunpack.c.h.b16 %v69
    %v777 = vunpack.c.l.b16 %v70
    %v778 = vunpack.c.h.b16 %v70
    %v779 = vunpack.c.l.b16 %v71
    %v780 = vunpack.c.h.b16 %v71
    %v781 = vunpack.c.l.b16 %v72
    %v782 = vunpack.c.h.b16 %v72
    %v783 = vunpack.c.l.b16 %v73
    %v784 = vunpack.c.h.b16 %v73
    %v785 = vunpack.c.l.b16 %v74
    %v786 = vunpack.c.h.b16 %v74
    %v787 = vunpack.c.l.b16 %v75
    %v788 = vunpack.c.h.b16 %v75
    %v789 = vunpack.c.l.b16 %v76
    %v790 = vunpack.c.h.b16 %v76
    %v791 = vunpack.c.l.b16 %v77
    %v792 = vunpack.c.h.b16 %v77
    %v793 = vunpack.c.l.b16 %v78
    %v794 = vunpack.c.h.b16 %v78
    %v795 = vunpack.c.l.b16 %v79
    %v796 = vunpack.c.h.b16 %v79
    %v797 = vunpack.c.l.b16 %v80
    %v798 = vunpack.c.h.b16 %v80
    %v799 = vunpack.c.l.b16 %v81
    %v800 = vunpack.c.h.b16 %v81
    %v801 = vunpack.c.l.b16 %v82
    %v802 = vunpack.c.h.b16 %v82
    %v803 = vunpack.c.l.b16 %v83
    %v804 = vunpack.c.h.b16 %v83
    %v805 = vunpack.c.l.b16 %v84
    %v806 = vunpack.c.h.b16 %v84
    %v807 = vunpack.c.l.b16 %v85
    %v808 = vunpack.c.h.b16 %v85
    %v809 = vunpack.c.l.b16 %v86
    %v810 = vunpack.c.h.b16 %v86
    %v811 = vunpack.c.l.b16 %v87
    %v812 = vunpack.c.h.b16 %v87
    %v813 = vunpack.c.l.b16 %v88
    %v814 = vunpack.c.h.b16 %v88
    %v815 = vunpack.c.l.b16 %v89
    %v816 = vunpack.c.h.b16 %v89
    %v817 = vunpack.c.l.b16 %v90
    %v818 = vunpack.c.h.b16 %v90
    %v819 = vunpack.c.l.b16 %v91
    %v820 = vunpack.c.h.b16 %v91
    %v821 = vunpack.c.l.b16 %v92
    %v822 = vunpack.c.h.b16 %v92
    %v823 = vunpack.c.l.b16 %v93
    %v824 = vunpack.c.h.b16 %v93
    %v825 = vunpack.c.l.b16 %v94
    %v826 = vunpack.c.h.b16 %v94
    %v827 = vunpack.c.l.b16 %v95
    %v828 = vunpack.c.h.b16 %v95
    %v829 = vunpack.c.l.b16 %v96
    %v830 = vunpack.c.h.b16 %v96
    %v831 = vunpack.c.l.b16 %v97
    %v832 = vunpack.c.h.b16 %v97
    %v833 = vunpack.c.l.b16 %v98
    %v834 = vunpack.c.h.b16 %v98
    %v835 = vunpack.c.l.b16 %v99
    %v836 = vunpack.c.h.b16 %v99
    %v837 = vunpack.c.l.b16 %v100
    %v838 = vunpack.c.h.b16 %v100
    %v839 = vunpack.c.l.b16 %v101
    %v840 = vunpack.c.h.b16 %v101
    %v841 = vunpack.c.l.b16 %v102
    %v842 = vunpack.c.h.b16 %v102
    %v843 = vunpack.c.l.b16 %v103
    %v844 = vunpack.c.h.b16 %v103
    %v845 = vunpack.c.l.b16 %v104
    %v846 = vunpack.c.h.b16 %v104
    %v847 = vunpack.c.l.b16 %v105
    %v848 = vunpack.c.h.b16 %v105
    %v849 = vunpack.c.l.b16 %v106
    %v850 = vunpack.c.h.b16 %v106
    %v851 = vunpack.c.l.b16 %v107
    %v852 = vunpack.c.h.b16 %v107
    %v853 = vunpack.c.l.b16 %v108
    %v854 = vunpack.c.h.b16 %v108
    %v855 = vunpack.c.l.b16 %v109
    %v856 = vunpack.c.h.b16 %v109
    %v857 = vunpack.c.l.b16 %v110
    %v858 = vunpack.c.h.b16 %v110
    %v859 = vunpack.c.l.b16 %v111
    %v860 = vunpack.c.h.b16 %v111
    %v861 = vunpack.c.l.b16 %v112
    %v862 = vunpack.c.h.b16 %v112
    %v863 = vunpack.c.l.b16 %v113
    %v864 = vunpack.c.h.b16 %v113
    %v865 = vunpack.c.l.b16 %v114
    %v866 = vunpack.c.h.b16 %v114
    %v867 = vunpack.c.l.b16 %v115
    %v868 = vunpack.c.h.b16 %v115
    %v869 = vunpack.c.l.b16 %v116
    %v870 = vunpack.c.h.b16 %v116
    %v871 = vunpack.c.l.b16 %v117
    %v872 = vunpack.c.h.b16 %v117
    %v873 = vunpack.c.l.b16 %v118
    %v874 = vunpack.c.h.b16 %v118
    %v875 = vunpack.c.l.b16 %v119
    %v876 = vunpack.c.h.b16 %v119
    %v877 = vunpack.c.l.b16 %v120
    %v878 = vunpack.c.h.b16 %v120
    %v879 = vunpack.c.l.b16 %v121
    %v880 = vunpack.c.h.b16 %v121
    %v881 = vunpack.c.l.b16 %v122
    %v882 = vunpack.c.h.b16 %v122
    %v883 = vunpack.c.l.b16 %v123
    %v884 = vunpack.c.h.b16 %v123
    %v885 = vunpack.c.l.b16 %v124
    %v886 = vunpack.c.h.b16 %v124
    %v887 = vunpack.c.l.b16 %v125
    %v888 = vunpack.c.h.b16 %v125
    %v889 = vunpack.c.l.b16 %v126
    %v890 = vunpack.c.h.b16 %v126
    %v891 = vunpack.c.l.b16 %v127
    %v892 = vunpack.c.h.b16 %v127
    %v893 = vunpack.c.l.b16 %v128
    %v894 = vunpack.c.h.b16 %v128
    %v895 = vunpack.c.l.b16 %v129
    %v896 = vunpack.c.h.b16 %v129
    %v897 = vunpack.c.l.b16 %v130
    %v898 = vunpack.c.h.b16 %v130
    %v899 = vunpack.c.l.b16 %v131
    %v900 = vunpack.c.h.b16 %v131
    %v901 = vunpack.c.l.b16 %v132
    %v902 = vunpack.c.h.b16 %v132
    %v903 = vunpack.c.l.b16 %v133
    %v904 = vunpack.c.h.b16 %v133
    %v905 = vunpack.c.l.b16 %v134
    %v906 = vunpack.c.h.b16 %v134
    %v907 = vunpack.c.l.b16 %v135
    %v908 = vunpack.c.h.b16 %v135
    %v909 = vunpack.c.l.b16 %v136
    %v910 = vunpack.c.h.b16 %v136
    %v911 = vunpack.c.l.b16 %v137
    %v912 = vunpack.c.h.b16 %v137
    %v913 = vunpack.c.l.b16 %v138
    %v914 = vunpack.c.h.b16 %v138
    %v915 = vunpack.c.l.b16 %v139
    %v916 = vunpack.c.h.b16 %v139
    %v917 = vunpack.c.l.b16 %v140
    %v918 = vunpack.c.h.b16 %v140
    %v919 = vunpack.c.l.b16 %v141
    %v920 = vunpack.c.h.b16 %v141
    %v921 = vunpack.c.l.b16 %v142
    %v922 = vunpack.c.h.b16 %v142
    %v923 = vunpack.c.l.b16 %v143
    %v924 = vunpack.c.h.b16 %v143
    %v925 = vunpack.c.l.b16 %v144
    %v926 = vunpack.c.h.b16 %v144
    %v927 = vunpack.c.l.b16 %v145
    %v928 = vunpack.c.h.b16 %v145
    %v929 = vunpack.c.l.b16 %v146
    %v930 = vunpack.c.h.b16 %v146
    %v931 = vunpack.c.l.b16 %v147
    %v932 = vunpack.c.h.b16 %v147
    %v933 = vunpack.c.l.b16 %v148
    %v934 = vunpack.c.h.b16 %v148
    %v935 = vunpack.c.l.b16 %v149
    %v936 = vunpack.c.h.b16 %v149
    %v937 = vunpack.c.l.b16 %v150
    %v938 = vunpack.c.h.b16 %v150
    %v939 = vunpack.c.l.b16 %v151
    %v940 = vunpack.c.h.b16 %v151
    %v941 = vunpack.c.l.b16 %v152
    %v942 = vunpack.c.h.b16 %v152
    %v943 = vunpack.c.l.b16 %v153
    %v944 = vunpack.c.h.b16 %v153
    %v945 = vunpack.c.l.b16 %v154
    %v946 = vunpack.c.h.b16 %v154
    %v947 = vunpack.c.l.b16 %v155
    %v948 = vunpack.c.h.b16 %v155
    %v949 = vunpack.c.l.b16 %v156
    %v950 = vunpack.c.h.b16 %v156
    %v951 = vunpack.c.l.b16 %v157
    %v952 = vunpack.c.h.b16 %v157
    %v953 = vunpack.c.l.b16 %v158
    %v954 = vunpack.c.h.b16 %v158
    %v955 = vunpack.c.l.b16 %v159
    %v956 = vunpack.c.h.b16 %v159
    %v957 = vunpack.c.l.b16 %v160
    %v958 = vunpack.c.h.b16 %v160
    %v959 = vunpack.c.l.b16 %v161
    %v960 = vunpack.c.h.b16 %v161
    %v961 = vunpack.c.l.b16 %v162
    %v962 = vunpack.c.h.b16 %v162
    %v963 = vunpack.c.l.b16 %v163
    %v964 = vunpack.c.h.b16 %v163
    %v965 = vunpack.c.l.b16 %v164
    %v966 = vunpack.c.h.b16 %v164
    %v967 = vunpack.c.l.b16 %v165
    %v968 = vunpack.c.h.b16 %v165
    %v969 = vunpack.c.l.b16 %v166
    %v970 = vunpack.c.h.b16 %v166
    %v971 = vunpack.c.l.b16 %v167
    %v972 = vunpack.c.h.b16 %v167
    %v973 = vunpack.c.l.b16 %v168
    %v974 = vunpack.c.h.b16 %v168
    %v975 = vunpack.c.l.b16 %v169
    %v976 = vunpack.c.h.b16 %v169
    %v977 = vunpack.c.l.b16 %v170
    %v978 = vunpack.c.h.b16 %v170
    %v979 = vunpack.c.l.b16 %v171
    %v980 = vunpack.c.h.b16 %v171
    %v981 = vunpack.c.l.b16 %v172
    %v982 = vunpack.c.h.b16 %v172
    %v983 = vunpack.c.l.b16 %v173
    %v984 = vunpack.c.h.b16 %v173
    %v985 = vunpack.c.l.b16 %v174
    %v986 = vunpack.c.h.b16 %v174
    %v987 = vunpack.c.l.b16 %v175
    %v988 = vunpack.c.h.b16 %v175
    %v989 = vunpack.c.l.b16 %v176
    %v990 = vunpack.c.h.b16 %v176
    %v991 = vunpack.c.l.b16 %v177
    %v992 = vunpack.c.h.b16 %v177
    %v993 = vunpack.c.l.b16 %v178
    %v994 = vunpack.c.h.b16 %v178
    %v995 = vunpack.c.l.b16 %v179
    %v996 = vunpack.c.h.b16 %v179
    %v997 = vunpack.c.l.b16 %v180
    %v998 = vunpack.c.h.b16 %v180
    %v999 = vunpack.c.l.b16 %v181
    %v1000 = vunpack.c.h.b16 %v181
    %v1001 = vunpack.c.l.b16 %v182
    %v1002 = vunpack.c.h.b16 %v182
    %v1003 = vunpack.c.l.b16 %v183
    %v1004 = vunpack.c.h.b16 %v183
    %v1005 = vunpack.c.l.b16 %v184
    %v1006 = vunpack.c.h.b16 %v184
    %v1007 = vunpack.c.l.b16 %v185
    %v1008 = vunpack.c.h.b16 %v185
    %v1009 = vunpack.c.l.b16 %v186
    %v1010 = vunpack.c.h.b16 %v186
    %v1011 = vunpack.c.l.b16 %v187
    %v1012 = vunpack.c.h.b16 %v187
    %v1013 = vunpack.c.l.b16 %v188
    %v1014 = vunpack.c.h.b16 %v188
    %v1015 = vunpack.c.l.b16 %v189
    %v1016 = vunpack.c.h.b16 %v189
    %v1017 = vunpack.c.l.b16 %v190
    %v1018 = vunpack.c.h.b16 %v190
    %v1019 = vunpack.c.l.b16 %v191
    %v1020 = vunpack.c.h.b16 %v191
    %v1021 = vunpack.c.l.b16 %v192
    %v1022 = vunpack.c.h.b16 %v192
    %v1023 = vunpack.c.l.b16 %v193
    %v1024 = vunpack.c.h.b16 %v193
    %v1025 = vunpack.c.l.b16 %v194
    %v1026 = vunpack.c.h.b16 %v194
    %v1027 = vunpack.c.l.b16 %v195
    %v1028 = vunpack.c.h.b16 %v195
    %v1029 = vunpack.c.l.b16 %v196
    %v1030 = vunpack.c.h.b16 %v196
    %v1031 = vunpack.c.l.b16 %v197
    %v1032 = vunpack.c.h.b16 %v197
    %v1033 = vunpack.c.l.b16 %v198
    %v1034 = vunpack.c.h.b16 %v198
    %v1035 = vunpack.c.l.b16 %v199
    %v1036 = vunpack.c.h.b16 %v199
    %v1037 = vunpack.c.l.b16 %v200
    %v1038 = vunpack.c.h.b16 %v200
    %v1039 = vunpack.c.l.b16 %v201
    %v1040 = vunpack.c.h.b16 %v201
    %v1041 = vunpack.c.l.b16 %v202
    %v1042 = vunpack.c.h.b16 %v202
    %v1043 = vunpack.c.l.b16 %v203
    %v1044 = vunpack.c.h.b16 %v203
    %v1045 = vunpack.c.l.b16 %v204
    %v1046 = vunpack.c.h.b16 %v204
    %v1047 = vunpack.c.l.b16 %v205
    %v1048 = vunpack.c.h.b16 %v205
    %v1049 = vunpack.c.l.b16 %v206
    %v1050 = vunpack.c.h.b16 %v206
    %v1051 = vunpack.c.l.b16 %v207
    %v1052 = vunpack.c.h.b16 %v207
    %v1053 = vunpack.c.l.b16 %v208
    %v1054 = vunpack.c.h.b16 %v208
    %v1055 = vunpack.c.l.b16 %v209
    %v1056 = vunpack.c.h.b16 %v209
    %v1057 = vunpack.c.l.b16 %v210
    %v1058 = vunpack.c.h.b16 %v210
    %v1059 = vunpack.c.l.b16 %v211
    %v1060 = vunpack.c.h.b16 %v211
    %v1061 = vunpack.c.l.b16 %v212
    %v1062 = vunpack.c.h.b16 %v212
    %v1063 = vunpack.c.l.b16 %v213
    %v1064 = vunpack.c.h.b16 %v213
    %v1065 = vunpack.c.l.b16 %v214
    %v1066 = vunpack.c.h.b16 %v214
    %v1067 = vunpack.c.l.b16 %v215
    %v1068 = vunpack.c.h.b16 %v215
    %v1069 = vunpack.c.l.b16 %v216
    %v1070 = vunpack.c.h.b16 %v216
    %v1071 = vunpack.c.l.b16 %v217
    %v1072 = vunpack.c.h.b16 %v217
    %v1073 = vunpack.c.l.b16 %v218
    %v1074 = vunpack.c.h.b16 %v218
    %v1075 = vunpack.c.l.b16 %v219
    %v1076 = vunpack.c.h.b16 %v219
    %v1077 = vunpack.c.l.b16 %v220
    %v1078 = vunpack.c.h.b16 %v220
    %v1079 = vunpack.c.l.b16 %v221
    %v1080 = vunpack.c.h.b16 %v221
    %v1081 = vunpack.c.l.b16 %v222
    %v1082 = vunpack.c.h.b16 %v222
    %v1083 = vunpack.c.l.b16 %v223
    %v1084 = vunpack.c.h.b16 %v223
    %v1085 = vunpack.c.l.b16 %v224
    %v1086 = vunpack.c.h.b16 %v224
    %v1087 = vunpack.c.l.b16 %v225
    %v1088 = vunpack.c.h.b16 %v225
    %v1089 = vunpack.c.l.b16 %v226
    %v1090 = vunpack.c.h.b16 %v226
    %v1091 = vunpack.c.l.b16 %v227
    %v1092 = vunpack.c.h.b16 %v227
    %v1093 = vunpack.c.l.b16 %v228
    %v1094 = vunpack.c.h.b16 %v228
    %v1095 = vunpack.c.l.b16 %v229
    %v1096 = vunpack.c.h.b16 %v229
    %v1097 = vunpack.c.l.b16 %v230
    %v1098 = vunpack.c.h.b16 %v230
    %v1099 = vunpack.c.l.b16 %v231
    %v1100 = vunpack.c.h.b16 %v231
    %v1101 = vunpack.c.l.b16 %v232
    %v1102 = vunpack.c.h.b16 %v232
    %v1103 = vunpack.c.l.b16 %v233
    %v1104 = vunpack.c.h.b16 %v233
    %v1105 = vunpack.c.l.b16 %v234
    %v1106 = vunpack.c.h.b16 %v234
    %v1107 = vunpack.c.l.b16 %v235
    %v1108 = vunpack.c.h.b16 %v235
    %v1109 = vunpack.c.l.b16 %v236
    %v1110 = vunpack.c.h.b16 %v236
    %v1111 = vunpack.c.l.b16 %v237
    %v1112 = vunpack.c.h.b16 %v237
    %v1113 = vunpack.c.l.b16 %v238
    %v1114 = vunpack.c.h.b16 %v238
    %v1115 = vunpack.c.l.b16 %v239
    %v1116 = vunpack.c.h.b16 %v239
    %v1117 = vunpack.c.l.b16 %v240
    %v1118 = vunpack.c.h.b16 %v240
    %v1119 = vunpack.c.l.b16 %v241
    %v1120 = vunpack.c.h.b16 %v241
    %v1121 = vunpack.c.l.b16 %v242
    %v1122 = vunpack.c.h.b16 %v242
    %v1123 = vunpack.c.l.b16 %v243
    %v1124 = vunpack.c.h.b16 %v243
    %v1125 = vunpack.c.l.b16 %v244
    %v1126 = vunpack.c.h.b16 %v244
    %v1127 = vunpack.c.l.b16 %v245
    %v1128 = vunpack.c.h.b16 %v245
    %v1129 = vunpack.c.l.b16 %v246
    %v1130 = vunpack.c.h.b16 %v246
    %v1131 = vunpack.c.l.b16 %v247
    %v1132 = vunpack.c.h.b16 %v247
    %v1133 = vunpack.c.l.b16 %v248
    %v1134 = vunpack.c.h.b16 %v248
    %v1135 = vunpack.c.l.b16 %v249
    %v1136 = vunpack.c.h.b16 %v249
    %v1137 = vunpack.c.l.b16 %v250
    %v1138 = vunpack.c.h.b16 %v250
    %v1139 = vunpack.c.l.b16 %v251
    %v1140 = vunpack.c.h.b16 %v251
    %v1141 = vunpack.c.l.b16 %v252
    %v1142 = vunpack.c.h.b16 %v252
    %v1143 = vunpack.c.l.b16 %v253
    %v1144 = vunpack.c.h.b16 %v253
    %v1145 = vunpack.c.l.b16 %v254
    %v1146 = vunpack.c.h.b16 %v254
    %v1147 = vunpack.c.l.b16 %v255
    %v1148 = vunpack.c.h.b16 %v255
    %v1149 = vunpack.c.l.b16 %v256
    %v1150 = vunpack.c.h.b16 %v256
    %v1151 = vunpack.c.l.b16 %v257
    %v1152 = vunpack.c.h.b16 %v257
    %v1153 = vunpack.c.l.b16 %v258
    %v1154 = vunpack.c.h.b16 %v258
    %v1155 = vunpack.c.l.b16 %v259
    %v1156 = vunpack.c.h.b16 %v259
    %v1157 = vunpack.c.l.b16 %v260
    %v1158 = vunpack.c.h.b16 %v260
    %v1159 = vunpack.c.l.b16 %v261
    %v1160 = vunpack.c.h.b16 %v261
    %v1161 = vunpack.c.l.b16 %v262
    %v1162 = vunpack.c.h.b16 %v262
    %v1163 = vunpack.c.l.b16 %v263
    %v1164 = vunpack.c.h.b16 %v263
    %v1165 = vunpack.c.l.b16 %v264
    %v1166 = vunpack.c.h.b16 %v264
    %v1167 = vunpack.c.l.b16 %v265
    %v1168 = vunpack.c.h.b16 %v265
    %v1169 = vunpack.c.l.b16 %v266
    %v1170 = vunpack.c.h.b16 %v266
    %v1171 = vunpack.c.l.b16 %v267
    %v1172 = vunpack.c.h.b16 %v267
    %v1173 = vunpack.c.l.b16 %v268
    %v1174 = vunpack.c.h.b16 %v268
    %v1175 = vunpack.c.l.b16 %v269
    %v1176 = vunpack.c.h.b16 %v269
    %v1177 = vunpack.c.l.b16 %v270
    %v1178 = vunpack.c.h.b16 %v270
    %v1179 = vunpack.c.l.b16 %v271
    %v1180 = vunpack.c.h.b16 %v271
    %v1181 = vunpack.c.l.b16 %v272
    %v1182 = vunpack.c.h.b16 %v272
    %v1183 = vunpack.c.l.b16 %v273
    %v1184 = vunpack.c.h.b16 %v273
    %v1185 = vunpack.c.l.b16 %v274
    %v1186 = vunpack.c.h.b16 %v274
    %v1187 = vunpack.c.l.b16 %v275
    %v1188 = vunpack.c.h.b16 %v275
    %v1189 = vunpack.c.l.b16 %v276
    %v1190 = vunpack.c.h.b16 %v276
    %v1191 = vunpack.c.l.b16 %v277
    %v1192 = vunpack.c.h.b16 %v277
    %v1193 = vunpack.c.l.b16 %v278
    %v1194 = vunpack.c.h.b16 %v278
    %v1195 = vunpack.c.l.b16 %v279
    %v1196 = vunpack.c.h.b16 %v279
    %v1197 = vunpack.c.l.b16 %v280
    %v1198 = vunpack.c.h.b16 %v280
    %v1199 = vunpack.c.l.b16 %v281
    %v1200 = vunpack.c.h.b16 %v281
    %v1201 = vunpack.c.l.b16 %v282
    %v1202 = vunpack.c.h.b16 %v282
    %v1203 = vpack.c.b16 %v759, %v755
    %v1204 = vpack.c.b16 %v760, %v756
    %v1205 = vpack.c.b16 %v761, %v757
    %v1206 = vpack.c.b16 %v762, %v758
    %v1207 = vpack.c.b16 %v767, %v763
    %v1208 = vpack.c.b16 %v768, %v764
    %v1209 = vpack.c.b16 %v769, %v765
    %v1210 = vpack.c.b16 %v770, %v766
    %v1211 = vpack.c.b16 %v775, %v771
    %v1212 = vpack.c.b16 %v776, %v772
    %v1213 = vpack.c.b16 %v777, %v773
    %v1214 = vpack.c.b16 %v778, %v774
    %v1215 = vpack.c.b16 %v783, %v779
    %v1216 = vpack.c.b16 %v784, %v780
    %v1217 = vpack.c.b16 %v785, %v781
    %v1218 = vpack.c.b16 %v786, %v782
    %v1219 = vpack.c.b16 %v791, %v787
    %v1220 = vpack.c.b16 %v792, %v788
    %v1221 = vpack.c.b16 %v793, %v789
    %v1222 = vpack.c.b16 %v794, %v790
    %v1223 = vpack.c.b16 %v799, %v795
    %v1224 = vpack.c.b16 %v800, %v796
    %v1225 = vpack.c.b16 %v801, %v797
    %v1226 = vpack.c.b16 %v802, %v798
    %v1227 = vpack.c.b16 %v807, %v803
    %v1228 = vpack.c.b16 %v808, %v804
    %v1229 = vpack.c.b16 %v809, %v805
    %v1230 = vpack.c.b16 %v810, %v806
    %v1231 = vpack.c.b16 %v815, %v811
    %v1232 = vpack.c.b16 %v816, %v812
    %v1233 = vpack.c.b16 %v817, %v813
    %v1234 = vpack.c.b16 %v818, %v814
    %v1235 = vpack.c.b16 %v823, %v819
    %v1236 = vpack.c.b16 %v824, %v820
    %v1237 = vpack.c.b16 %v825, %v821
    %v1238 = vpack.c.b16 %v826, %v822
    %v1239 = vpack.c.b16 %v831, %v827
    %v1240 = vpack.c.b16 %v832, %v828
    %v1241 = vpack.c.b16 %v833, %v829
    %v1242 = vpack.c.b16 %v834, %v830
    %v1243 = vpack.c.b16 %v839, %v835
    %v1244 = vpack.c.b16 %v840, %v836
    %v1245 = vpack.c.b16 %v841, %v837
    %v1246 = vpack.c.b16 %v842, %v838
    %v1247 = vpack.c.b16 %v847, %v843
    %v1248 = vpack.c.b16 %v848, %v844
    %v1249 = vpack.c.b16 %v849, %v845
    %v1250 = vpack.c.b16 %v850, %v846
    %v1251 = vpack.c.b16 %v855, %v851
    %v1252 = vpack.c.b16 %v856, %v852
    %v1253 = vpack.c.b16 %v857, %v853
    %v1254 = vpack.c.b16 %v858, %v854
    %v1255 = vpack.c.b16 %v863, %v859
    %v1256 = vpack.c.b16 %v864, %v860
    %v1257 = vpack.c.b16 %v865, %v861
    %v1258 = vpack.c.b16 %v866, %v862
    %v1259 = vpack.c.b16 %v871, %v867
    %v1260 = vpack.c.b16 %v872, %v868
    %v1261 = vpack.c.b16 %v873, %v869
    %v1262 = vpack.c.b16 %v874, %v870
    %v1263 = vpack.c.b16 %v879, %v875
    %v1264 = vpack.c.b16 %v880, %v876
    %v1265 = vpack.c.b16 %v881, %v877
    %v1266 = vpack.c.b16 %v882, %v878
    %v1267 = vpack.c.b16 %v887, %v883
    %v1268 = vpack.c.b16 %v888, %v884
    %v1269 = vpack.c.b16 %v889, %v885
    %v1270 = vpack.c.b16 %v890, %v886
    %v1271 = vpack.c.b16 %v895, %v891
    %v1272 = vpack.c.b16 %v896, %v892
    %v1273 = vpack.c.b16 %v897, %v893
    %v1274 = vpack.c.b16 %v898, %v894
    %v1275 = vpack.c.b16 %v903, %v899
    %v1276 = vpack.c.b16 %v904, %v900
    %v1277 = vpack.c.b16 %v905, %v901
    %v1278 = vpack.c.b16 %v906, %v902
    %v1279 = vpack.c.b16 %v911, %v907
    %v1280 = vpack.c.b16 %v912, %v908
    %v1281 = vpack.c.b16 %v913, %v909
    %v1282 = vpack.c.b16 %v914, %v910
    %v1283 = vpack.c.b16 %v919, %v915
    %v1284 = vpack.c.b16 %v920, %v916
    %v1285 = vpack.c.b16 %v921, %v917
    %v1286 = vpack.c.b16 %v922, %v918
    %v1287 = vpack.c.b16 %v927, %v923
    %v1288 = vpack.c.b16 %v928, %v924
    %v1289 = vpack.c.b16 %v929, %v925
    %v1290 = vpack.c.b16 %v930, %v926
    %v1291 = vpack.c.b16 %v935, %v931
    %v1292 = vpack.c.b16 %v936, %v932
    %v1293 = vpack.c.b16 %v937, %v933
    %v1294 = vpack.c.b16 %v938, %v934
    %v1295 = vpack.c.b16 %v943, %v939
    %v1296 = vpack.c.b16 %v944, %v940
    %v1297 = vpack.c.b16 %v945, %v941
    %v1298 = vpack.c.b16 %v946, %v942
    %v1299 = vpack.c.b16 %v951, %v947
    %v1300 = vpack.c.b16 %v952, %v948
    %v1301 = vpack.c.b16 %v953, %v949
    %v1302 = vpack.c.b16 %v954, %v950
    %v1303 = vpack.c.b16 %v959, %v955
    %v1304 = vpack.c.b16 %v960, %v956
    %v1305 = vpack.c.b16 %v961, %v957
    %v1306 = vpack.c.b16 %v962, %v958
    %v1307 = vpack.c.b16 %v967, %v963
    %v1308 = vpack.c.b16 %v968, %v964
    %v1309 = vpack.c.b16 %v969, %v965
    %v1310 = vpack.c.b16 %v970, %v966
    %v1311 = vpack.c.b16 %v975, %v971
    %v1312 = vpack.c.b16 %v976, %v972
    %v1313 = vpack.c.b16 %v977, %v973
    %v1314 = vpack.c.b16 %v978, %v974
    %v1315 = vpack.c.b16 %v983, %v979
    %v1316 = vpack.c.b16 %v984, %v980
    %v1317 = vpack.c.b16 %v985, %v981
    %v1318 = vpack.c.b16 %v986, %v982
    %v1319 = vpack.c.b16 %v991, %v987
    %v1320 = vpack.c.b16 %v992, %v988
    %v1321 = vpack.c.b16 %v993, %v989
    %v1322 = vpack.c.b16 %v994, %v990
    %v1323 = vpack.c.b16 %v999, %v995
    %v1324 = vpack.c.b16 %v1000, %v996
    %v1325 = vpack.c.b16 %v1001, %v997
    %v1326 = vpack.c.b16 %v1002, %v998
    %v1327 = vpack.c.b16 %v1007, %v1003
    %v1328 = vpack.c.b16 %v1008, %v1004
    %v1329 = vpack.c.b16 %v1009, %v1005
    %v1330 = vpack.c.b16 %v1010, %v1006
    %v1331 = vpack.c.b16 %v1015, %v1011
    %v1332 = vpack.c.b16 %v1016, %v1012
    %v1333 = vpack.c.b16 %v1017, %v1013
    %v1334 = vpack.c.b16 %v1018, %v1014
    %v1335 = vpack.c.b16 %v1023, %v1019
    %v1336 = vpack.c.b16 %v1024, %v1020
    %v1337 = vpack.c.b16 %v1025, %v1021
    %v1338 = vpack.c.b16 %v1026, %v1022
    %v1339 = vpack.c.b16 %v1031, %v1027
    %v1340 = vpack.c.b16 %v1032, %v1028
    %v1341 = vpack.c.b16 %v1033, %v1029
    %v1342 = vpack.c.b16 %v1034, %v1030
    %v1343 = vpack.c.b16 %v1039, %v1035
    %v1344 = vpack.c.b16 %v1040, %v1036
    %v1345 = vpack.c.b16 %v1041, %v1037
    %v1346 = vpack.c.b16 %v1042, %v1038
    %v1347 = vpack.c.b16 %v1047, %v1043
    %v1348 = vpack.c.b16 %v1048, %v1044
    %v1349 = vpack.c.b16 %v1049, %v1045
    %v1350 = vpack.c.b16 %v1050, %v1046
    %v1351 = vpack.c.b16 %v1055, %v1051
    %v1352 = vpack.c.b16 %v1056, %v1052
    %v1353 = vpack.c.b16 %v1057, %v1053
    %v1354 = vpack.c.b16 %v1058, %v1054
    %v1355 = vpack.c.b16 %v1063, %v1059
    %v1356 = vpack.c.b16 %v1064, %v1060
    %v1357 = vpack.c.b16 %v1065, %v1061
    %v1358 = vpack.c.b16 %v1066, %v1062
    %v1359 = vpack.c.b16 %v1071, %v1067
    %v1360 = vpack.c.b16 %v1072, %v1068
    %v1361 = vpack.c.b16 %v1073, %v1069
    %v1362 = vpack.c.b16 %v1074, %v1070
    %v1363 = vpack.c.b16 %v1079, %v1075
    %v1364 = vpack.c.b16 %v1080, %v1076
    %v1365 = vpack.c.b16 %v1081, %v1077
    %v1366 = vpack.c.b16 %v1082, %v1078
    %v1367 = vpack.c.b16 %v1087, %v1083
    %v1368 = vpack.c.b16 %v1088, %v1084
    %v1369 = vpack.c.b16 %v1089, %v1085
    %v1370 = vpack.c.b16 %v1090, %v1086
    %v1371 = vpack.c.b16 %v1095, %v1091
    %v1372 = vpack.c.b16 %v1096, %v1092
    %v1373 = vpack.c.b16 %v1097, %v1093
    %v1374 = vpack.c.b16 %v1098, %v1094
    %v1375 = vpack.c.b16 %v1103, %v1099
    %v1376 = vpack.c.b16 %v1104, %v1100
    %v1377 = vpack.c.b16 %v1105, %v1101
    %v1378 = vpack.c.b16 %v1106, %v1102
    %v1379 = vpack.c.b16 %v1111, %v1107
    %v1380 = vpack.c.b16 %v1112, %v1108
    %v1381 = vpack.c.b16 %v1113, %v1109
    %v1382 = vpack.c.b16 %v1114, %v1110
    %v1383 = vpack.c.b16 %v1119, %v1115
    %v1384 = vpack.c.b16 %v1120, %v1116
    %v1385 = vpack.c.b16 %v1121, %v1117
    %v1386 = vpack.c.b16 %v1122, %v1118
    %v1387 = vpack.c.b16 %v1127, %v1123
    %v1388 = vpack.c.b16 %v1128, %v1124
    %v1389 = vpack.c.b16 %v1129, %v1125
    %v1390 = vpack.c.b16 %v1130, %v1126
    %v1391 = vpack.c.b16 %v1135, %v1131
    %v1392 = vpack.c.b16 %v1136, %v1132
    %v1393 = vpack.c.b16 %v1137, %v1133
    %v1394 = vpack.c.b16 %v1138, %v1134
    %v1395 = vpack.c.b16 %v1143, %v1139
    %v1396 = vpack.c.b16 %v1144, %v1140
    %v1397 = vpack.c.b16 %v1145, %v1141
    %v1398 = vpack.c.b16 %v1146, %v1142
    %v1399 = vpack.c.b16 %v1151, %v1147
    %v1400 = vpack.c.b16 %v1152, %v1148
    %v1401 = vpack.c.b16 %v1153, %v1149
    %v1402 = vpack.c.b16 %v1154, %v1150
    %v1403 = vpack.c.b16 %v1159, %v1155
    %v1404 = vpack.c.b16 %v1160, %v1156
    %v1405 = vpack.c.b16 %v1161, %v1157
    %v1406 = vpack.c.b16 %v1162, %v1158
    %v1407 = vpack.c.b16 %v1167, %v1163
    %v1408 = vpack.c.b16 %v1168, %v1164
    %v1409 = vpack.c.b16 %v1169, %v1165
    %v1410 = vpack.c.b16 %v1170, %v1166
    %v1411 = vpack.c.b16 %v1175, %v1171
    %v1412 = vpack.c.b16 %v1176, %v1172
    %v1413 = vpack.c.b16 %v1177, %v1173
    %v1414 = vpack.c.b16 %v1178, %v1174
    %v1415 = vpack.c.b16 %v1183, %v1179
    %v1416 = vpack.c.b16 %v1184, %v1180
    %v1417 = vpack.c.b16 %v1185, %v1181
    %v1418 = vpack.c.b16 %v1186, %v1182
    %v1419 = vpack.c.b16 %v1191, %v1187
    %v1420 = vpack.c.b16 %v1192, %v1188
    %v1421 = vpack.c.b16 %v1193, %v1189
    %v1422 = vpack.c.b16 %v1194, %v1190
    %v1423 = vpack.c.b16 %v1199, %v1195
    %v1424 = vpack.c.b16 %v1200, %v1196
    %v1425 = vpack.c.b16 %v1201, %v1197
    %v1426 = vpack.c.b16 %v1202, %v1198
    %1651 = vmatpush.bf16.msra.mxu0 %v1231
    %1652 = vmatpush.bf16.msra.mxu0 %v1227
    %1653 = vmatpush.bf16.msra.mxu0 %v1223
    %1654 = vmatpush.bf16.msra.mxu0 %v1219
    %1655 = vmatpush.bf16.msra.mxu0 %v1215
    %1656 = vmatpush.bf16.msra.mxu0 %v1211
    %1657 = vmatpush.bf16.msra.mxu0 %v1207
    %1658 = vmatpush.bf16.msra.mxu0 %v1203
    %1659 = vmatmul.bf16.gmra.mxu0 %v517
    %v1660 = vpop.f32.mrf.mxu0
    %v1661 = vadd.f32 %v477, %v1660
    %v1662 = vpop.f32.mrf.mxu0
    %1663 = vdwg.mxu0
    %1664 = vmatpush.bf16.msra.mxu0 %v1263
    %1665 = vmatpush.bf16.msra.mxu0 %v1259
    %1666 = vmatpush.bf16.msra.mxu0 %v1255
    %1667 = vmatpush.bf16.msra.mxu0 %v1251
    %1668 = vmatpush.bf16.msra.mxu0 %v1247
    %1669 = vmatpush.bf16.msra.mxu0 %v1243
    %1670 = vmatpush.bf16.msra.mxu0 %v1239
    %1671 = vmatpush.bf16.msra.mxu0 %v1235
    %1672 = vmatmul.bf16.gmra.mxu0 %v518
    %v1673 = vpop.f32.mrf.mxu0
    %v1674 = vadd.f32 %v1661, %v1673
    %v1675 = vpop.f32.mrf.mxu0
    %1676 = vdwg.mxu0
    %1677 = vmatpush.bf16.msra.mxu0 %v1295
    %1678 = vmatpush.bf16.msra.mxu0 %v1291
    %1679 = vmatpush.bf16.msra.mxu0 %v1287
    %1680 = vmatpush.bf16.msra.mxu0 %v1283
    %1681 = vmatpush.bf16.msra.mxu0 %v1279
    %1682 = vmatpush.bf16.msra.mxu0 %v1275
    %1683 = vmatpush.bf16.msra.mxu0 %v1271
    %1684 = vmatpush.bf16.msra.mxu0 %v1267
    %1685 = vmatmul.bf16.gmra.mxu0 %v519
    %v1686 = vpop.f32.mrf.mxu0
    %v1687 = vadd.f32 %v1674, %v1686
    %v1688 = vpop.f32.mrf.mxu0
    %1689 = vdwg.mxu0
    %1690 = vmatpush.bf16.msra.mxu0 %v1327
    %1691 = vmatpush.bf16.msra.mxu0 %v1323
    %1692 = vmatpush.bf16.msra.mxu0 %v1319
    %1693 = vmatpush.bf16.msra.mxu0 %v1315
    %1694 = vmatpush.bf16.msra.mxu0 %v1311
    %1695 = vmatpush.bf16.msra.mxu0 %v1307
    %1696 = vmatpush.bf16.msra.mxu0 %v1303
    %1697 = vmatpush.bf16.msra.mxu0 %v1299
    %1698 = vmatmul.bf16.gmra.mxu0 %v520
    %v1699 = vpop.f32.mrf.mxu0
    %v1700 = vadd.f32 %v1687, %v1699
    %v1701 = vpop.f32.mrf.mxu0
    %1702 = vdwg.mxu0
    %1703 = vmatpush.bf16.msra.mxu0 %v1359
    %1704 = vmatpush.bf16.msra.mxu0 %v1355
    %1705 = vmatpush.bf16.msra.mxu0 %v1351
    %1706 = vmatpush.bf16.msra.mxu0 %v1347
    %1707 = vmatpush.bf16.msra.mxu0 %v1343
    %1708 = vmatpush.bf16.msra.mxu0 %v1339
    %1709 = vmatpush.bf16.msra.mxu0 %v1335
    %1710 = vmatpush.bf16.msra.mxu0 %v1331
    %1711 = vmatmul.bf16.gmra.mxu0 %v521
    %v1712 = vpop.f32.mrf.mxu0
    %v1713 = vadd.f32 %v1700, %v1712
    %v1714 = vpop.f32.mrf.mxu0
    %1715 = vdwg.mxu0
    %1716 = vmatpush.bf16.msra.mxu0 %v1391
    %1717 = vmatpush.bf16.msra.mxu0 %v1387
    %1718 = vmatpush.bf16.msra.mxu0 %v1383
    %1719 = vmatpush.bf16.msra.mxu0 %v1379
    %1720 = vmatpush.bf16.msra.mxu0 %v1375
    %1721 = vmatpush.bf16.msra.mxu0 %v1371
    %1722 = vmatpush.bf16.msra.mxu0 %v1367
    %1723 = vmatpush.bf16.msra.mxu0 %v1363
    %1724 = vmatmul.bf16.gmra.mxu0 %v522
    %v1725 = vpop.f32.mrf.mxu0
    %v1726 = vadd.f32 %v1713, %v1725
    %v1727 = vpop.f32.mrf.mxu0
    %1728 = vdwg.mxu0
    %1729 = vmatpush.bf16.msra.mxu0 %v1423
    %1730 = vmatpush.bf16.msra.mxu0 %v1419
    %1731 = vmatpush.bf16.msra.mxu0 %v1415
    %1732 = vmatpush.bf16.msra.mxu0 %v1411
    %1733 = vmatpush.bf16.msra.mxu0 %v1407
    %1734 = vmatpush.bf16.msra.mxu0 %v1403
    %1735 = vmatpush.bf16.msra.mxu0 %v1399
    %1736 = vmatpush.bf16.msra.mxu0 %v1395
    %1737 = vmatmul.bf16.gmra.mxu0 %v523
    %v1738 = vpop.f32.mrf.mxu0
    %v1739 = vadd.f32 %v1726, %v1738
    %v1740 = vpop.f32.mrf.mxu0
    %1741 = vdwg.mxu0
    %1742 = vmatpush.bf16.msra.mxu0 %v1232
    %1743 = vmatpush.bf16.msra.mxu0 %v1228
    %1744 = vmatpush.bf16.msra.mxu0 %v1224
    %1745 = vmatpush.bf16.msra.mxu0 %v1220
    %1746 = vmatpush.bf16.msra.mxu0 %v1216
    %1747 = vmatpush.bf16.msra.mxu0 %v1212
    %1748 = vmatpush.bf16.msra.mxu0 %v1208
    %1749 = vmatpush.bf16.msra.mxu0 %v1204
    %1750 = vmatmul.bf16.gmra.mxu0 %v517
    %v1751 = vpop.f32.mrf.mxu0
    %v1752 = vadd.f32 %v478, %v1751
    %v1753 = vpop.f32.mrf.mxu0
    %1754 = vdwg.mxu0
    %1755 = vmatpush.bf16.msra.mxu0 %v1264
    %1756 = vmatpush.bf16.msra.mxu0 %v1260
    %1757 = vmatpush.bf16.msra.mxu0 %v1256
    %1758 = vmatpush.bf16.msra.mxu0 %v1252
    %1759 = vmatpush.bf16.msra.mxu0 %v1248
    %1760 = vmatpush.bf16.msra.mxu0 %v1244
    %1761 = vmatpush.bf16.msra.mxu0 %v1240
    %1762 = vmatpush.bf16.msra.mxu0 %v1236
    %1763 = vmatmul.bf16.gmra.mxu0 %v518
    %v1764 = vpop.f32.mrf.mxu0
    %v1765 = vadd.f32 %v1752, %v1764
    %v1766 = vpop.f32.mrf.mxu0
    %1767 = vdwg.mxu0
    %1768 = vmatpush.bf16.msra.mxu0 %v1296
    %1769 = vmatpush.bf16.msra.mxu0 %v1292
    %1770 = vmatpush.bf16.msra.mxu0 %v1288
    %1771 = vmatpush.bf16.msra.mxu0 %v1284
    %1772 = vmatpush.bf16.msra.mxu0 %v1280
    %1773 = vmatpush.bf16.msra.mxu0 %v1276
    %1774 = vmatpush.bf16.msra.mxu0 %v1272
    %1775 = vmatpush.bf16.msra.mxu0 %v1268
    %1776 = vmatmul.bf16.gmra.mxu0 %v519
    %v1777 = vpop.f32.mrf.mxu0
    %v1778 = vadd.f32 %v1765, %v1777
    %v1779 = vpop.f32.mrf.mxu0
    %1780 = vdwg.mxu0
    %1781 = vmatpush.bf16.msra.mxu0 %v1328
    %1782 = vmatpush.bf16.msra.mxu0 %v1324
    %1783 = vmatpush.bf16.msra.mxu0 %v1320
    %1784 = vmatpush.bf16.msra.mxu0 %v1316
    %1785 = vmatpush.bf16.msra.mxu0 %v1312
    %1786 = vmatpush.bf16.msra.mxu0 %v1308
    %1787 = vmatpush.bf16.msra.mxu0 %v1304
    %1788 = vmatpush.bf16.msra.mxu0 %v1300
    %1789 = vmatmul.bf16.gmra.mxu0 %v520
    %v1790 = vpop.f32.mrf.mxu0
    %v1791 = vadd.f32 %v1778, %v1790
    %v1792 = vpop.f32.mrf.mxu0
    %1793 = vdwg.mxu0
    %1794 = vmatpush.bf16.msra.mxu0 %v1360
    %1795 = vmatpush.bf16.msra.mxu0 %v1356
    %1796 = vmatpush.bf16.msra.mxu0 %v1352
    %1797 = vmatpush.bf16.msra.mxu0 %v1348
    %1798 = vmatpush.bf16.msra.mxu0 %v1344
    %1799 = vmatpush.bf16.msra.mxu0 %v1340
    %1800 = vmatpush.bf16.msra.mxu0 %v1336
    %1801 = vmatpush.bf16.msra.mxu0 %v1332
    %1802 = vmatmul.bf16.gmra.mxu0 %v521
    %v1803 = vpop.f32.mrf.mxu0
    %v1804 = vadd.f32 %v1791, %v1803
    %v1805 = vpop.f32.mrf.mxu0
    %1806 = vdwg.mxu0
    %1807 = vmatpush.bf16.msra.mxu0 %v1392
    %1808 = vmatpush.bf16.msra.mxu0 %v1388
    %1809 = vmatpush.bf16.msra.mxu0 %v1384
    %1810 = vmatpush.bf16.msra.mxu0 %v1380
    %1811 = vmatpush.bf16.msra.mxu0 %v1376
    %1812 = vmatpush.bf16.msra.mxu0 %v1372
    %1813 = vmatpush.bf16.msra.mxu0 %v1368
    %1814 = vmatpush.bf16.msra.mxu0 %v1364
    %1815 = vmatmul.bf16.gmra.mxu0 %v522
    %v1816 = vpop.f32.mrf.mxu0
    %v1817 = vadd.f32 %v1804, %v1816
    %v1818 = vpop.f32.mrf.mxu0
    %1819 = vdwg.mxu0
    %1820 = vmatpush.bf16.msra.mxu0 %v1424
    %1821 = vmatpush.bf16.msra.mxu0 %v1420
    %1822 = vmatpush.bf16.msra.mxu0 %v1416
    %1823 = vmatpush.bf16.msra.mxu0 %v1412
    %1824 = vmatpush.bf16.msra.mxu0 %v1408
    %1825 = vmatpush.bf16.msra.mxu0 %v1404
    %1826 = vmatpush.bf16.msra.mxu0 %v1400
    %1827 = vmatpush.bf16.msra.mxu0 %v1396
    %1828 = vmatmul.bf16.gmra.mxu0 %v523
    %v1829 = vpop.f32.mrf.mxu0
    %v1830 = vadd.f32 %v1817, %v1829
    %v1831 = vpop.f32.mrf.mxu0
    %1832 = vdwg.mxu0
    %1833 = vmatpush.bf16.msra.mxu0 %v1233
    %1834 = vmatpush.bf16.msra.mxu0 %v1229
    %1835 = vmatpush.bf16.msra.mxu0 %v1225
    %1836 = vmatpush.bf16.msra.mxu0 %v1221
    %1837 = vmatpush.bf16.msra.mxu0 %v1217
    %1838 = vmatpush.bf16.msra.mxu0 %v1213
    %1839 = vmatpush.bf16.msra.mxu0 %v1209
    %1840 = vmatpush.bf16.msra.mxu0 %v1205
    %1841 = vmatmul.bf16.gmra.mxu0 %v517
    %v1842 = vpop.f32.mrf.mxu0
    %v1843 = vadd.f32 %v479, %v1842
    %v1844 = vpop.f32.mrf.mxu0
    %1845 = vdwg.mxu0
    %1846 = vmatpush.bf16.msra.mxu0 %v1265
    %1847 = vmatpush.bf16.msra.mxu0 %v1261
    %1848 = vmatpush.bf16.msra.mxu0 %v1257
    %1849 = vmatpush.bf16.msra.mxu0 %v1253
    %1850 = vmatpush.bf16.msra.mxu0 %v1249
    %1851 = vmatpush.bf16.msra.mxu0 %v1245
    %1852 = vmatpush.bf16.msra.mxu0 %v1241
    %1853 = vmatpush.bf16.msra.mxu0 %v1237
    %1854 = vmatmul.bf16.gmra.mxu0 %v518
    %v1855 = vpop.f32.mrf.mxu0
    %v1856 = vadd.f32 %v1843, %v1855
    %v1857 = vpop.f32.mrf.mxu0
    %1858 = vdwg.mxu0
    %1859 = vmatpush.bf16.msra.mxu0 %v1297
    %1860 = vmatpush.bf16.msra.mxu0 %v1293
    %1861 = vmatpush.bf16.msra.mxu0 %v1289
    %1862 = vmatpush.bf16.msra.mxu0 %v1285
    %1863 = vmatpush.bf16.msra.mxu0 %v1281
    %1864 = vmatpush.bf16.msra.mxu0 %v1277
    %1865 = vmatpush.bf16.msra.mxu0 %v1273
    %1866 = vmatpush.bf16.msra.mxu0 %v1269
    %1867 = vmatmul.bf16.gmra.mxu0 %v519
    %v1868 = vpop.f32.mrf.mxu0
    %v1869 = vadd.f32 %v1856, %v1868
    %v1870 = vpop.f32.mrf.mxu0
    %1871 = vdwg.mxu0
    %1872 = vmatpush.bf16.msra.mxu0 %v1329
    %1873 = vmatpush.bf16.msra.mxu0 %v1325
    %1874 = vmatpush.bf16.msra.mxu0 %v1321
    %1875 = vmatpush.bf16.msra.mxu0 %v1317
    %1876 = vmatpush.bf16.msra.mxu0 %v1313
    %1877 = vmatpush.bf16.msra.mxu0 %v1309
    %1878 = vmatpush.bf16.msra.mxu0 %v1305
    %1879 = vmatpush.bf16.msra.mxu0 %v1301
    %1880 = vmatmul.bf16.gmra.mxu0 %v520
    %v1881 = vpop.f32.mrf.mxu0
    %v1882 = vadd.f32 %v1869, %v1881
    %v1883 = vpop.f32.mrf.mxu0
    %1884 = vdwg.mxu0
    %1885 = vmatpush.bf16.msra.mxu0 %v1361
    %1886 = vmatpush.bf16.msra.mxu0 %v1357
    %1887 = vmatpush.bf16.msra.mxu0 %v1353
    %1888 = vmatpush.bf16.msra.mxu0 %v1349
    %1889 = vmatpush.bf16.msra.mxu0 %v1345
    %1890 = vmatpush.bf16.msra.mxu0 %v1341
    %1891 = vmatpush.bf16.msra.mxu0 %v1337
    %1892 = vmatpush.bf16.msra.mxu0 %v1333
    %1893 = vmatmul.bf16.gmra.mxu0 %v521
    %v1894 = vpop.f32.mrf.mxu0
    %v1895 = vadd.f32 %v1882, %v1894
    %v1896 = vpop.f32.mrf.mxu0
    %1897 = vdwg.mxu0
    %1898 = vmatpush.bf16.msra.mxu0 %v1393
    %1899 = vmatpush.bf16.msra.mxu0 %v1389
    %1900 = vmatpush.bf16.msra.mxu0 %v1385
    %1901 = vmatpush.bf16.msra.mxu0 %v1381
    %1902 = vmatpush.bf16.msra.mxu0 %v1377
    %1903 = vmatpush.bf16.msra.mxu0 %v1373
    %1904 = vmatpush.bf16.msra.mxu0 %v1369
    %1905 = vmatpush.bf16.msra.mxu0 %v1365
    %1906 = vmatmul.bf16.gmra.mxu0 %v522
    %v1907 = vpop.f32.mrf.mxu0
    %v1908 = vadd.f32 %v1895, %v1907
    %v1909 = vpop.f32.mrf.mxu0
    %1910 = vdwg.mxu0
    %1911 = vmatpush.bf16.msra.mxu0 %v1425
    %1912 = vmatpush.bf16.msra.mxu0 %v1421
    %1913 = vmatpush.bf16.msra.mxu0 %v1417
    %1914 = vmatpush.bf16.msra.mxu0 %v1413
    %1915 = vmatpush.bf16.msra.mxu0 %v1409
    %1916 = vmatpush.bf16.msra.mxu0 %v1405
    %1917 = vmatpush.bf16.msra.mxu0 %v1401
    %1918 = vmatpush.bf16.msra.mxu0 %v1397
    %1919 = vmatmul.bf16.gmra.mxu0 %v523
    %v1920 = vpop.f32.mrf.mxu0
    %v1921 = vadd.f32 %v1908, %v1920
    %v1922 = vpop.f32.mrf.mxu0
    %1923 = vdwg.mxu0
    %1924 = vmatpush.bf16.msra.mxu0 %v1234
    %1925 = vmatpush.bf16.msra.mxu0 %v1230
    %1926 = vmatpush.bf16.msra.mxu0 %v1226
    %1927 = vmatpush.bf16.msra.mxu0 %v1222
    %1928 = vmatpush.bf16.msra.mxu0 %v1218
    %1929 = vmatpush.bf16.msra.mxu0 %v1214
    %1930 = vmatpush.bf16.msra.mxu0 %v1210
    %1931 = vmatpush.bf16.msra.mxu0 %v1206
    %1932 = vmatmul.bf16.gmra.mxu0 %v517
    %v1933 = vpop.f32.mrf.mxu0
    %v1934 = vadd.f32 %v480, %v1933
    %v1935 = vpop.f32.mrf.mxu0
    %1936 = vdwg.mxu0
    %1937 = vmatpush.bf16.msra.mxu0 %v1266
    %1938 = vmatpush.bf16.msra.mxu0 %v1262
    %1939 = vmatpush.bf16.msra.mxu0 %v1258
    %1940 = vmatpush.bf16.msra.mxu0 %v1254
    %1941 = vmatpush.bf16.msra.mxu0 %v1250
    %1942 = vmatpush.bf16.msra.mxu0 %v1246
    %1943 = vmatpush.bf16.msra.mxu0 %v1242
    %1944 = vmatpush.bf16.msra.mxu0 %v1238
    %1945 = vmatmul.bf16.gmra.mxu0 %v518
    %v1946 = vpop.f32.mrf.mxu0
    %v1947 = vadd.f32 %v1934, %v1946
    %v1948 = vpop.f32.mrf.mxu0
    %1949 = vdwg.mxu0
    %1950 = vmatpush.bf16.msra.mxu0 %v1298
    %1951 = vmatpush.bf16.msra.mxu0 %v1294
    %1952 = vmatpush.bf16.msra.mxu0 %v1290
    %1953 = vmatpush.bf16.msra.mxu0 %v1286
    %1954 = vmatpush.bf16.msra.mxu0 %v1282
    %1955 = vmatpush.bf16.msra.mxu0 %v1278
    %1956 = vmatpush.bf16.msra.mxu0 %v1274
    %1957 = vmatpush.bf16.msra.mxu0 %v1270
    %1958 = vmatmul.bf16.gmra.mxu0 %v519
    %v1959 = vpop.f32.mrf.mxu0
    %v1960 = vadd.f32 %v1947, %v1959
    %v1961 = vpop.f32.mrf.mxu0
    %1962 = vdwg.mxu0
    %1963 = vmatpush.bf16.msra.mxu0 %v1330
    %1964 = vmatpush.bf16.msra.mxu0 %v1326
    %1965 = vmatpush.bf16.msra.mxu0 %v1322
    %1966 = vmatpush.bf16.msra.mxu0 %v1318
    %1967 = vmatpush.bf16.msra.mxu0 %v1314
    %1968 = vmatpush.bf16.msra.mxu0 %v1310
    %1969 = vmatpush.bf16.msra.mxu0 %v1306
    %1970 = vmatpush.bf16.msra.mxu0 %v1302
    %1971 = vmatmul.bf16.gmra.mxu0 %v520
    %v1972 = vpop.f32.mrf.mxu0
    %v1973 = vadd.f32 %v1960, %v1972
    %v1974 = vpop.f32.mrf.mxu0
    %1975 = vdwg.mxu0
    %1976 = vmatpush.bf16.msra.mxu0 %v1362
    %1977 = vmatpush.bf16.msra.mxu0 %v1358
    %1978 = vmatpush.bf16.msra.mxu0 %v1354
    %1979 = vmatpush.bf16.msra.mxu0 %v1350
    %1980 = vmatpush.bf16.msra.mxu0 %v1346
    %1981 = vmatpush.bf16.msra.mxu0 %v1342
    %1982 = vmatpush.bf16.msra.mxu0 %v1338
    %1983 = vmatpush.bf16.msra.mxu0 %v1334
    %1984 = vmatmul.bf16.gmra.mxu0 %v521
    %v1985 = vpop.f32.mrf.mxu0
    %v1986 = vadd.f32 %v1973, %v1985
    %v1987 = vpop.f32.mrf.mxu0
    %1988 = vdwg.mxu0
    %1989 = vmatpush.bf16.msra.mxu0 %v1394
    %1990 = vmatpush.bf16.msra.mxu0 %v1390
    %1991 = vmatpush.bf16.msra.mxu0 %v1386
    %1992 = vmatpush.bf16.msra.mxu0 %v1382
    %1993 = vmatpush.bf16.msra.mxu0 %v1378
    %1994 = vmatpush.bf16.msra.mxu0 %v1374
    %1995 = vmatpush.bf16.msra.mxu0 %v1370
    %1996 = vmatpush.bf16.msra.mxu0 %v1366
    %1997 = vmatmul.bf16.gmra.mxu0 %v522
    %v1998 = vpop.f32.mrf.mxu0
    %v1999 = vadd.f32 %v1986, %v1998
    %v2000 = vpop.f32.mrf.mxu0
    %2001 = vdwg.mxu0
    %2002 = vmatpush.bf16.msra.mxu0 %v1426
    %2003 = vmatpush.bf16.msra.mxu0 %v1422
    %2004 = vmatpush.bf16.msra.mxu0 %v1418
    %2005 = vmatpush.bf16.msra.mxu0 %v1414
    %2006 = vmatpush.bf16.msra.mxu0 %v1410
    %2007 = vmatpush.bf16.msra.mxu0 %v1406
    %2008 = vmatpush.bf16.msra.mxu0 %v1402
    %2009 = vmatpush.bf16.msra.mxu0 %v1398
    %2010 = vmatmul.bf16.gmra.mxu0 %v523
    %v2011 = vpop.f32.mrf.mxu0
    %v2012 = vadd.f32 %v1999, %v2011
    %v2013 = vpop.f32.mrf.mxu0
    %2014 = vdwg.mxu0
    %v2015 = vmul.f32 %v1739, 0.5
    %v2016 = vmul.f32 %v1830, 0.5
    %v2017 = vmul.f32 %v1921, 0.5
    %v2018 = vmul.f32 %v2012, 0.5
    %v2019 = vtanh.pop %v2015
    %v2020 = vtanh.pop %v2016
    %v2021 = vtanh.pop %v2017
    %v2022 = vtanh.pop %v2018
    %v2023 = vadd.f32 %v2019, 1.0
    %v2024 = vadd.f32 %v2020, 1.0
    %v2025 = vadd.f32 %v2021, 1.0
    %v2026 = vadd.f32 %v2022, 1.0
    %v2027 = vmul.f32 %v2023, 0.5
    %v2028 = vmul.f32 %v2024, 0.5
    %v2029 = vmul.f32 %v2025, 0.5
    %v2030 = vmul.f32 %v2026, 0.5
    %v2031 = vpack.c.bf16 %v2027, %v2027
    %v2032 = vpack.c.bf16 %v2028, %v2028
    %v2033 = vpack.c.bf16 %v2029, %v2029
    %v2034 = vpack.c.bf16 %v2030, %v2030
    %v2163 = vunpack.c.l.b16 %v283
    %v2164 = vunpack.c.h.b16 %v283
    %v2165 = vunpack.c.l.b16 %v284
    %v2166 = vunpack.c.h.b16 %v284
    %v2167 = vunpack.c.l.b16 %v285
    %v2168 = vunpack.c.h.b16 %v285
    %v2169 = vunpack.c.l.b16 %v286
    %v2170 = vunpack.c.h.b16 %v286
    %v2171 = vunpack.c.l.b16 %v287
    %v2172 = vunpack.c.h.b16 %v287
    %v2173 = vunpack.c.l.b16 %v288
    %v2174 = vunpack.c.h.b16 %v288
    %v2175 = vunpack.c.l.b16 %v289
    %v2176 = vunpack.c.h.b16 %v289
    %v2177 = vunpack.c.l.b16 %v290
    %v2178 = vunpack.c.h.b16 %v290
    %v2179 = vunpack.c.l.b16 %v291
    %v2180 = vunpack.c.h.b16 %v291
    %v2181 = vunpack.c.l.b16 %v292
    %v2182 = vunpack.c.h.b16 %v292
    %v2183 = vunpack.c.l.b16 %v293
    %v2184 = vunpack.c.h.b16 %v293
    %v2185 = vunpack.c.l.b16 %v294
    %v2186 = vunpack.c.h.b16 %v294
    %v2187 = vunpack.c.l.b16 %v295
    %v2188 = vunpack.c.h.b16 %v295
    %v2189 = vunpack.c.l.b16 %v296
    %v2190 = vunpack.c.h.b16 %v296
    %v2191 = vunpack.c.l.b16 %v297
    %v2192 = vunpack.c.h.b16 %v297
    %v2193 = vunpack.c.l.b16 %v298
    %v2194 = vunpack.c.h.b16 %v298
    %v2195 = vunpack.c.l.b16 %v299
    %v2196 = vunpack.c.h.b16 %v299
    %v2197 = vunpack.c.l.b16 %v300
    %v2198 = vunpack.c.h.b16 %v300
    %v2199 = vunpack.c.l.b16 %v301
    %v2200 = vunpack.c.h.b16 %v301
    %v2201 = vunpack.c.l.b16 %v302
    %v2202 = vunpack.c.h.b16 %v302
    %v2203 = vunpack.c.l.b16 %v303
    %v2204 = vunpack.c.h.b16 %v303
    %v2205 = vunpack.c.l.b16 %v304
    %v2206 = vunpack.c.h.b16 %v304
    %v2207 = vunpack.c.l.b16 %v305
    %v2208 = vunpack.c.h.b16 %v305
    %v2209 = vunpack.c.l.b16 %v306
    %v2210 = vunpack.c.h.b16 %v306
    %v2211 = vunpack.c.l.b16 %v307
    %v2212 = vunpack.c.h.b16 %v307
    %v2213 = vunpack.c.l.b16 %v308
    %v2214 = vunpack.c.h.b16 %v308
    %v2215 = vunpack.c.l.b16 %v309
    %v2216 = vunpack.c.h.b16 %v309
    %v2217 = vunpack.c.l.b16 %v310
    %v2218 = vunpack.c.h.b16 %v310
    %v2219 = vunpack.c.l.b16 %v311
    %v2220 = vunpack.c.h.b16 %v311
    %v2221 = vunpack.c.l.b16 %v312
    %v2222 = vunpack.c.h.b16 %v312
    %v2223 = vunpack.c.l.b16 %v313
    %v2224 = vunpack.c.h.b16 %v313
    %v2225 = vunpack.c.l.b16 %v314
    %v2226 = vunpack.c.h.b16 %v314
    %v2227 = vunpack.c.l.b16 %v315
    %v2228 = vunpack.c.h.b16 %v315
    %v2229 = vunpack.c.l.b16 %v316
    %v2230 = vunpack.c.h.b16 %v316
    %v2231 = vunpack.c.l.b16 %v317
    %v2232 = vunpack.c.h.b16 %v317
    %v2233 = vunpack.c.l.b16 %v318
    %v2234 = vunpack.c.h.b16 %v318
    %v2235 = vunpack.c.l.b16 %v319
    %v2236 = vunpack.c.h.b16 %v319
    %v2237 = vunpack.c.l.b16 %v320
    %v2238 = vunpack.c.h.b16 %v320
    %v2239 = vunpack.c.l.b16 %v321
    %v2240 = vunpack.c.h.b16 %v321
    %v2241 = vunpack.c.l.b16 %v322
    %v2242 = vunpack.c.h.b16 %v322
    %v2243 = vunpack.c.l.b16 %v323
    %v2244 = vunpack.c.h.b16 %v323
    %v2245 = vunpack.c.l.b16 %v324
    %v2246 = vunpack.c.h.b16 %v324
    %v2247 = vunpack.c.l.b16 %v325
    %v2248 = vunpack.c.h.b16 %v325
    %v2249 = vunpack.c.l.b16 %v326
    %v2250 = vunpack.c.h.b16 %v326
    %v2251 = vunpack.c.l.b16 %v327
    %v2252 = vunpack.c.h.b16 %v327
    %v2253 = vunpack.c.l.b16 %v328
    %v2254 = vunpack.c.h.b16 %v328
    %v2255 = vunpack.c.l.b16 %v329
    %v2256 = vunpack.c.h.b16 %v329
    %v2257 = vunpack.c.l.b16 %v330
    %v2258 = vunpack.c.h.b16 %v330
    %v2259 = vunpack.c.l.b16 %v331
    %v2260 = vunpack.c.h.b16 %v331
    %v2261 = vunpack.c.l.b16 %v332
    %v2262 = vunpack.c.h.b16 %v332
    %v2263 = vunpack.c.l.b16 %v333
    %v2264 = vunpack.c.h.b16 %v333
    %v2265 = vunpack.c.l.b16 %v334
    %v2266 = vunpack.c.h.b16 %v334
    %v2267 = vunpack.c.l.b16 %v335
    %v2268 = vunpack.c.h.b16 %v335
    %v2269 = vunpack.c.l.b16 %v336
    %v2270 = vunpack.c.h.b16 %v336
    %v2271 = vunpack.c.l.b16 %v337
    %v2272 = vunpack.c.h.b16 %v337
    %v2273 = vunpack.c.l.b16 %v338
    %v2274 = vunpack.c.h.b16 %v338
    %v2275 = vunpack.c.l.b16 %v339
    %v2276 = vunpack.c.h.b16 %v339
    %v2277 = vunpack.c.l.b16 %v340
    %v2278 = vunpack.c.h.b16 %v340
    %v2279 = vunpack.c.l.b16 %v341
    %v2280 = vunpack.c.h.b16 %v341
    %v2281 = vunpack.c.l.b16 %v342
    %v2282 = vunpack.c.h.b16 %v342
    %v2283 = vunpack.c.l.b16 %v343
    %v2284 = vunpack.c.h.b16 %v343
    %v2285 = vunpack.c.l.b16 %v344
    %v2286 = vunpack.c.h.b16 %v344
    %v2287 = vunpack.c.l.b16 %v345
    %v2288 = vunpack.c.h.b16 %v345
    %v2289 = vunpack.c.l.b16 %v346
    %v2290 = vunpack.c.h.b16 %v346
    %v2291 = vunpack.c.l.b16 %v347
    %v2292 = vunpack.c.h.b16 %v347
    %v2293 = vunpack.c.l.b16 %v348
    %v2294 = vunpack.c.h.b16 %v348
    %v2295 = vunpack.c.l.b16 %v349
    %v2296 = vunpack.c.h.b16 %v349
    %v2297 = vunpack.c.l.b16 %v350
    %v2298 = vunpack.c.h.b16 %v350
    %v2299 = vunpack.c.l.b16 %v351
    %v2300 = vunpack.c.h.b16 %v351
    %v2301 = vunpack.c.l.b16 %v352
    %v2302 = vunpack.c.h.b16 %v352
    %v2303 = vunpack.c.l.b16 %v353
    %v2304 = vunpack.c.h.b16 %v353
    %v2305 = vunpack.c.l.b16 %v354
    %v2306 = vunpack.c.h.b16 %v354
    %v2307 = vunpack.c.l.b16 %v355
    %v2308 = vunpack.c.h.b16 %v355
    %v2309 = vunpack.c.l.b16 %v356
    %v2310 = vunpack.c.h.b16 %v356
    %v2311 = vunpack.c.l.b16 %v357
    %v2312 = vunpack.c.h.b16 %v357
    %v2313 = vunpack.c.l.b16 %v358
    %v2314 = vunpack.c.h.b16 %v358
    %v2315 = vunpack.c.l.b16 %v359
    %v2316 = vunpack.c.h.b16 %v359
    %v2317 = vunpack.c.l.b16 %v360
    %v2318 = vunpack.c.h.b16 %v360
    %v2319 = vunpack.c.l.b16 %v361
    %v2320 = vunpack.c.h.b16 %v361
    %v2321 = vunpack.c.l.b16 %v362
    %v2322 = vunpack.c.h.b16 %v362
    %v2323 = vunpack.c.l.b16 %v363
    %v2324 = vunpack.c.h.b16 %v363
    %v2325 = vunpack.c.l.b16 %v364
    %v2326 = vunpack.c.h.b16 %v364
    %v2327 = vunpack.c.l.b16 %v365
    %v2328 = vunpack.c.h.b16 %v365
    %v2329 = vunpack.c.l.b16 %v366
    %v2330 = vunpack.c.h.b16 %v366
    %v2331 = vunpack.c.l.b16 %v367
    %v2332 = vunpack.c.h.b16 %v367
    %v2333 = vunpack.c.l.b16 %v368
    %v2334 = vunpack.c.h.b16 %v368
    %v2335 = vunpack.c.l.b16 %v369
    %v2336 = vunpack.c.h.b16 %v369
    %v2337 = vunpack.c.l.b16 %v370
    %v2338 = vunpack.c.h.b16 %v370
    %v2339 = vunpack.c.l.b16 %v371
    %v2340 = vunpack.c.h.b16 %v371
    %v2341 = vunpack.c.l.b16 %v372
    %v2342 = vunpack.c.h.b16 %v372
    %v2343 = vunpack.c.l.b16 %v373
    %v2344 = vunpack.c.h.b16 %v373
    %v2345 = vunpack.c.l.b16 %v374
    %v2346 = vunpack.c.h.b16 %v374
    %v2347 = vunpack.c.l.b16 %v375
    %v2348 = vunpack.c.h.b16 %v375
    %v2349 = vunpack.c.l.b16 %v376
    %v2350 = vunpack.c.h.b16 %v376
    %v2351 = vunpack.c.l.b16 %v377
    %v2352 = vunpack.c.h.b16 %v377
    %v2353 = vunpack.c.l.b16 %v378
    %v2354 = vunpack.c.h.b16 %v378
    %v2355 = vunpack.c.l.b16 %v379
    %v2356 = vunpack.c.h.b16 %v379
    %v2357 = vunpack.c.l.b16 %v380
    %v2358 = vunpack.c.h.b16 %v380
    %v2359 = vunpack.c.l.b16 %v381
    %v2360 = vunpack.c.h.b16 %v381
    %v2361 = vunpack.c.l.b16 %v382
    %v2362 = vunpack.c.h.b16 %v382
    %v2363 = vunpack.c.l.b16 %v383
    %v2364 = vunpack.c.h.b16 %v383
    %v2365 = vunpack.c.l.b16 %v384
    %v2366 = vunpack.c.h.b16 %v384
    %v2367 = vunpack.c.l.b16 %v385
    %v2368 = vunpack.c.h.b16 %v385
    %v2369 = vunpack.c.l.b16 %v386
    %v2370 = vunpack.c.h.b16 %v386
    %v2371 = vunpack.c.l.b16 %v387
    %v2372 = vunpack.c.h.b16 %v387
    %v2373 = vunpack.c.l.b16 %v388
    %v2374 = vunpack.c.h.b16 %v388
    %v2375 = vunpack.c.l.b16 %v389
    %v2376 = vunpack.c.h.b16 %v389
    %v2377 = vunpack.c.l.b16 %v390
    %v2378 = vunpack.c.h.b16 %v390
    %v2379 = vunpack.c.l.b16 %v391
    %v2380 = vunpack.c.h.b16 %v391
    %v2381 = vunpack.c.l.b16 %v392
    %v2382 = vunpack.c.h.b16 %v392
    %v2383 = vunpack.c.l.b16 %v393
    %v2384 = vunpack.c.h.b16 %v393
    %v2385 = vunpack.c.l.b16 %v394
    %v2386 = vunpack.c.h.b16 %v394
    %v2387 = vunpack.c.l.b16 %v395
    %v2388 = vunpack.c.h.b16 %v395
    %v2389 = vunpack.c.l.b16 %v396
    %v2390 = vunpack.c.h.b16 %v396
    %v2391 = vunpack.c.l.b16 %v397
    %v2392 = vunpack.c.h.b16 %v397
    %v2393 = vunpack.c.l.b16 %v398
    %v2394 = vunpack.c.h.b16 %v398
    %v2395 = vunpack.c.l.b16 %v399
    %v2396 = vunpack.c.h.b16 %v399
    %v2397 = vunpack.c.l.b16 %v400
    %v2398 = vunpack.c.h.b16 %v400
    %v2399 = vunpack.c.l.b16 %v401
    %v2400 = vunpack.c.h.b16 %v401
    %v2401 = vunpack.c.l.b16 %v402
    %v2402 = vunpack.c.h.b16 %v402
    %v2403 = vunpack.c.l.b16 %v403
    %v2404 = vunpack.c.h.b16 %v403
    %v2405 = vunpack.c.l.b16 %v404
    %v2406 = vunpack.c.h.b16 %v404
    %v2407 = vunpack.c.l.b16 %v405
    %v2408 = vunpack.c.h.b16 %v405
    %v2409 = vunpack.c.l.b16 %v406
    %v2410 = vunpack.c.h.b16 %v406
    %v2411 = vunpack.c.l.b16 %v407
    %v2412 = vunpack.c.h.b16 %v407
    %v2413 = vunpack.c.l.b16 %v408
    %v2414 = vunpack.c.h.b16 %v408
    %v2415 = vunpack.c.l.b16 %v409
    %v2416 = vunpack.c.h.b16 %v409
    %v2417 = vunpack.c.l.b16 %v410
    %v2418 = vunpack.c.h.b16 %v410
    %v2419 = vpack.c.b16 %v2167, %v2163
    %v2420 = vpack.c.b16 %v2168, %v2164
    %v2421 = vpack.c.b16 %v2169, %v2165
    %v2422 = vpack.c.b16 %v2170, %v2166
    %v2423 = vpack.c.b16 %v2175, %v2171
    %v2424 = vpack.c.b16 %v2176, %v2172
    %v2425 = vpack.c.b16 %v2177, %v2173
    %v2426 = vpack.c.b16 %v2178, %v2174
    %v2427 = vpack.c.b16 %v2183, %v2179
    %v2428 = vpack.c.b16 %v2184, %v2180
    %v2429 = vpack.c.b16 %v2185, %v2181
    %v2430 = vpack.c.b16 %v2186, %v2182
    %v2431 = vpack.c.b16 %v2191, %v2187
    %v2432 = vpack.c.b16 %v2192, %v2188
    %v2433 = vpack.c.b16 %v2193, %v2189
    %v2434 = vpack.c.b16 %v2194, %v2190
    %v2435 = vpack.c.b16 %v2199, %v2195
    %v2436 = vpack.c.b16 %v2200, %v2196
    %v2437 = vpack.c.b16 %v2201, %v2197
    %v2438 = vpack.c.b16 %v2202, %v2198
    %v2439 = vpack.c.b16 %v2207, %v2203
    %v2440 = vpack.c.b16 %v2208, %v2204
    %v2441 = vpack.c.b16 %v2209, %v2205
    %v2442 = vpack.c.b16 %v2210, %v2206
    %v2443 = vpack.c.b16 %v2215, %v2211
    %v2444 = vpack.c.b16 %v2216, %v2212
    %v2445 = vpack.c.b16 %v2217, %v2213
    %v2446 = vpack.c.b16 %v2218, %v2214
    %v2447 = vpack.c.b16 %v2223, %v2219
    %v2448 = vpack.c.b16 %v2224, %v2220
    %v2449 = vpack.c.b16 %v2225, %v2221
    %v2450 = vpack.c.b16 %v2226, %v2222
    %v2451 = vpack.c.b16 %v2231, %v2227
    %v2452 = vpack.c.b16 %v2232, %v2228
    %v2453 = vpack.c.b16 %v2233, %v2229
    %v2454 = vpack.c.b16 %v2234, %v2230
    %v2455 = vpack.c.b16 %v2239, %v2235
    %v2456 = vpack.c.b16 %v2240, %v2236
    %v2457 = vpack.c.b16 %v2241, %v2237
    %v2458 = vpack.c.b16 %v2242, %v2238
    %v2459 = vpack.c.b16 %v2247, %v2243
    %v2460 = vpack.c.b16 %v2248, %v2244
    %v2461 = vpack.c.b16 %v2249, %v2245
    %v2462 = vpack.c.b16 %v2250, %v2246
    %v2463 = vpack.c.b16 %v2255, %v2251
    %v2464 = vpack.c.b16 %v2256, %v2252
    %v2465 = vpack.c.b16 %v2257, %v2253
    %v2466 = vpack.c.b16 %v2258, %v2254
    %v2467 = vpack.c.b16 %v2263, %v2259
    %v2468 = vpack.c.b16 %v2264, %v2260
    %v2469 = vpack.c.b16 %v2265, %v2261
    %v2470 = vpack.c.b16 %v2266, %v2262
    %v2471 = vpack.c.b16 %v2271, %v2267
    %v2472 = vpack.c.b16 %v2272, %v2268
    %v2473 = vpack.c.b16 %v2273, %v2269
    %v2474 = vpack.c.b16 %v2274, %v2270
    %v2475 = vpack.c.b16 %v2279, %v2275
    %v2476 = vpack.c.b16 %v2280, %v2276
    %v2477 = vpack.c.b16 %v2281, %v2277
    %v2478 = vpack.c.b16 %v2282, %v2278
    %v2479 = vpack.c.b16 %v2287, %v2283
    %v2480 = vpack.c.b16 %v2288, %v2284
    %v2481 = vpack.c.b16 %v2289, %v2285
    %v2482 = vpack.c.b16 %v2290, %v2286
    %v2483 = vpack.c.b16 %v2295, %v2291
    %v2484 = vpack.c.b16 %v2296, %v2292
    %v2485 = vpack.c.b16 %v2297, %v2293
    %v2486 = vpack.c.b16 %v2298, %v2294
    %v2487 = vpack.c.b16 %v2303, %v2299
    %v2488 = vpack.c.b16 %v2304, %v2300
    %v2489 = vpack.c.b16 %v2305, %v2301
    %v2490 = vpack.c.b16 %v2306, %v2302
    %v2491 = vpack.c.b16 %v2311, %v2307
    %v2492 = vpack.c.b16 %v2312, %v2308
    %v2493 = vpack.c.b16 %v2313, %v2309
    %v2494 = vpack.c.b16 %v2314, %v2310
    %v2495 = vpack.c.b16 %v2319, %v2315
    %v2496 = vpack.c.b16 %v2320, %v2316
    %v2497 = vpack.c.b16 %v2321, %v2317
    %v2498 = vpack.c.b16 %v2322, %v2318
    %v2499 = vpack.c.b16 %v2327, %v2323
    %v2500 = vpack.c.b16 %v2328, %v2324
    %v2501 = vpack.c.b16 %v2329, %v2325
    %v2502 = vpack.c.b16 %v2330, %v2326
    %v2503 = vpack.c.b16 %v2335, %v2331
    %v2504 = vpack.c.b16 %v2336, %v2332
    %v2505 = vpack.c.b16 %v2337, %v2333
    %v2506 = vpack.c.b16 %v2338, %v2334
    %v2507 = vpack.c.b16 %v2343, %v2339
    %v2508 = vpack.c.b16 %v2344, %v2340
    %v2509 = vpack.c.b16 %v2345, %v2341
    %v2510 = vpack.c.b16 %v2346, %v2342
    %v2511 = vpack.c.b16 %v2351, %v2347
    %v2512 = vpack.c.b16 %v2352, %v2348
    %v2513 = vpack.c.b16 %v2353, %v2349
    %v2514 = vpack.c.b16 %v2354, %v2350
    %v2515 = vpack.c.b16 %v2359, %v2355
    %v2516 = vpack.c.b16 %v2360, %v2356
    %v2517 = vpack.c.b16 %v2361, %v2357
    %v2518 = vpack.c.b16 %v2362, %v2358
    %v2519 = vpack.c.b16 %v2367, %v2363
    %v2520 = vpack.c.b16 %v2368, %v2364
    %v2521 = vpack.c.b16 %v2369, %v2365
    %v2522 = vpack.c.b16 %v2370, %v2366
    %v2523 = vpack.c.b16 %v2375, %v2371
    %v2524 = vpack.c.b16 %v2376, %v2372
    %v2525 = vpack.c.b16 %v2377, %v2373
    %v2526 = vpack.c.b16 %v2378, %v2374
    %v2527 = vpack.c.b16 %v2383, %v2379
    %v2528 = vpack.c.b16 %v2384, %v2380
    %v2529 = vpack.c.b16 %v2385, %v2381
    %v2530 = vpack.c.b16 %v2386, %v2382
    %v2531 = vpack.c.b16 %v2391, %v2387
    %v2532 = vpack.c.b16 %v2392, %v2388
    %v2533 = vpack.c.b16 %v2393, %v2389
    %v2534 = vpack.c.b16 %v2394, %v2390
    %v2535 = vpack.c.b16 %v2399, %v2395
    %v2536 = vpack.c.b16 %v2400, %v2396
    %v2537 = vpack.c.b16 %v2401, %v2397
    %v2538 = vpack.c.b16 %v2402, %v2398
    %v2539 = vpack.c.b16 %v2407, %v2403
    %v2540 = vpack.c.b16 %v2408, %v2404
    %v2541 = vpack.c.b16 %v2409, %v2405
    %v2542 = vpack.c.b16 %v2410, %v2406
    %v2543 = vpack.c.b16 %v2415, %v2411
    %v2544 = vpack.c.b16 %v2416, %v2412
    %v2545 = vpack.c.b16 %v2417, %v2413
    %v2546 = vpack.c.b16 %v2418, %v2414
    %2675 = vmatpush.bf16.msra.mxu0 %v2447
    %2676 = vmatpush.bf16.msra.mxu0 %v2443
    %2677 = vmatpush.bf16.msra.mxu0 %v2439
    %2678 = vmatpush.bf16.msra.mxu0 %v2435
    %2679 = vmatpush.bf16.msra.mxu0 %v2431
    %2680 = vmatpush.bf16.msra.mxu0 %v2427
    %2681 = vmatpush.bf16.msra.mxu0 %v2423
    %2682 = vmatpush.bf16.msra.mxu0 %v2419
    %2683 = vmatmul.bf16.gmra.mxu0 %v2031
    %v2684 = vpop.f32.mrf.mxu0
    %v2685 = vadd.f32 %v487, %v2684
    %v2686 = vpop.f32.mrf.mxu0
    %2687 = vdwg.mxu0
    %2688 = vmatpush.bf16.msra.mxu0 %v2479
    %2689 = vmatpush.bf16.msra.mxu0 %v2475
    %2690 = vmatpush.bf16.msra.mxu0 %v2471
    %2691 = vmatpush.bf16.msra.mxu0 %v2467
    %2692 = vmatpush.bf16.msra.mxu0 %v2463
    %2693 = vmatpush.bf16.msra.mxu0 %v2459
    %2694 = vmatpush.bf16.msra.mxu0 %v2455
    %2695 = vmatpush.bf16.msra.mxu0 %v2451
    %2696 = vmatmul.bf16.gmra.mxu0 %v2032
    %v2697 = vpop.f32.mrf.mxu0
    %v2698 = vadd.f32 %v2685, %v2697
    %v2699 = vpop.f32.mrf.mxu0
    %2700 = vdwg.mxu0
    %2701 = vmatpush.bf16.msra.mxu0 %v2511
    %2702 = vmatpush.bf16.msra.mxu0 %v2507
    %2703 = vmatpush.bf16.msra.mxu0 %v2503
    %2704 = vmatpush.bf16.msra.mxu0 %v2499
    %2705 = vmatpush.bf16.msra.mxu0 %v2495
    %2706 = vmatpush.bf16.msra.mxu0 %v2491
    %2707 = vmatpush.bf16.msra.mxu0 %v2487
    %2708 = vmatpush.bf16.msra.mxu0 %v2483
    %2709 = vmatmul.bf16.gmra.mxu0 %v2033
    %v2710 = vpop.f32.mrf.mxu0
    %v2711 = vadd.f32 %v2698, %v2710
    %v2712 = vpop.f32.mrf.mxu0
    %2713 = vdwg.mxu0
    %2714 = vmatpush.bf16.msra.mxu0 %v2543
    %2715 = vmatpush.bf16.msra.mxu0 %v2539
    %2716 = vmatpush.bf16.msra.mxu0 %v2535
    %2717 = vmatpush.bf16.msra.mxu0 %v2531
    %2718 = vmatpush.bf16.msra.mxu0 %v2527
    %2719 = vmatpush.bf16.msra.mxu0 %v2523
    %2720 = vmatpush.bf16.msra.mxu0 %v2519
    %2721 = vmatpush.bf16.msra.mxu0 %v2515
    %2722 = vmatmul.bf16.gmra.mxu0 %v2034
    %v2723 = vpop.f32.mrf.mxu0
    %v2724 = vadd.f32 %v2711, %v2723
    %v2725 = vpop.f32.mrf.mxu0
    %2726 = vdwg.mxu0
    %2727 = vmatpush.bf16.msra.mxu0 %v2448
    %2728 = vmatpush.bf16.msra.mxu0 %v2444
    %2729 = vmatpush.bf16.msra.mxu0 %v2440
    %2730 = vmatpush.bf16.msra.mxu0 %v2436
    %2731 = vmatpush.bf16.msra.mxu0 %v2432
    %2732 = vmatpush.bf16.msra.mxu0 %v2428
    %2733 = vmatpush.bf16.msra.mxu0 %v2424
    %2734 = vmatpush.bf16.msra.mxu0 %v2420
    %2735 = vmatmul.bf16.gmra.mxu0 %v2031
    %v2736 = vpop.f32.mrf.mxu0
    %v2737 = vadd.f32 %v488, %v2736
    %v2738 = vpop.f32.mrf.mxu0
    %2739 = vdwg.mxu0
    %2740 = vmatpush.bf16.msra.mxu0 %v2480
    %2741 = vmatpush.bf16.msra.mxu0 %v2476
    %2742 = vmatpush.bf16.msra.mxu0 %v2472
    %2743 = vmatpush.bf16.msra.mxu0 %v2468
    %2744 = vmatpush.bf16.msra.mxu0 %v2464
    %2745 = vmatpush.bf16.msra.mxu0 %v2460
    %2746 = vmatpush.bf16.msra.mxu0 %v2456
    %2747 = vmatpush.bf16.msra.mxu0 %v2452
    %2748 = vmatmul.bf16.gmra.mxu0 %v2032
    %v2749 = vpop.f32.mrf.mxu0
    %v2750 = vadd.f32 %v2737, %v2749
    %v2751 = vpop.f32.mrf.mxu0
    %2752 = vdwg.mxu0
    %2753 = vmatpush.bf16.msra.mxu0 %v2512
    %2754 = vmatpush.bf16.msra.mxu0 %v2508
    %2755 = vmatpush.bf16.msra.mxu0 %v2504
    %2756 = vmatpush.bf16.msra.mxu0 %v2500
    %2757 = vmatpush.bf16.msra.mxu0 %v2496
    %2758 = vmatpush.bf16.msra.mxu0 %v2492
    %2759 = vmatpush.bf16.msra.mxu0 %v2488
    %2760 = vmatpush.bf16.msra.mxu0 %v2484
    %2761 = vmatmul.bf16.gmra.mxu0 %v2033
    %v2762 = vpop.f32.mrf.mxu0
    %v2763 = vadd.f32 %v2750, %v2762
    %v2764 = vpop.f32.mrf.mxu0
    %2765 = vdwg.mxu0
    %2766 = vmatpush.bf16.msra.mxu0 %v2544
    %2767 = vmatpush.bf16.msra.mxu0 %v2540
    %2768 = vmatpush.bf16.msra.mxu0 %v2536
    %2769 = vmatpush.bf16.msra.mxu0 %v2532
    %2770 = vmatpush.bf16.msra.mxu0 %v2528
    %2771 = vmatpush.bf16.msra.mxu0 %v2524
    %2772 = vmatpush.bf16.msra.mxu0 %v2520
    %2773 = vmatpush.bf16.msra.mxu0 %v2516
    %2774 = vmatmul.bf16.gmra.mxu0 %v2034
    %v2775 = vpop.f32.mrf.mxu0
    %v2776 = vadd.f32 %v2763, %v2775
    %v2777 = vpop.f32.mrf.mxu0
    %2778 = vdwg.mxu0
    %2779 = vmatpush.bf16.msra.mxu0 %v2449
    %2780 = vmatpush.bf16.msra.mxu0 %v2445
    %2781 = vmatpush.bf16.msra.mxu0 %v2441
    %2782 = vmatpush.bf16.msra.mxu0 %v2437
    %2783 = vmatpush.bf16.msra.mxu0 %v2433
    %2784 = vmatpush.bf16.msra.mxu0 %v2429
    %2785 = vmatpush.bf16.msra.mxu0 %v2425
    %2786 = vmatpush.bf16.msra.mxu0 %v2421
    %2787 = vmatmul.bf16.gmra.mxu0 %v2031
    %v2788 = vpop.f32.mrf.mxu0
    %v2789 = vadd.f32 %v489, %v2788
    %v2790 = vpop.f32.mrf.mxu0
    %2791 = vdwg.mxu0
    %2792 = vmatpush.bf16.msra.mxu0 %v2481
    %2793 = vmatpush.bf16.msra.mxu0 %v2477
    %2794 = vmatpush.bf16.msra.mxu0 %v2473
    %2795 = vmatpush.bf16.msra.mxu0 %v2469
    %2796 = vmatpush.bf16.msra.mxu0 %v2465
    %2797 = vmatpush.bf16.msra.mxu0 %v2461
    %2798 = vmatpush.bf16.msra.mxu0 %v2457
    %2799 = vmatpush.bf16.msra.mxu0 %v2453
    %2800 = vmatmul.bf16.gmra.mxu0 %v2032
    %v2801 = vpop.f32.mrf.mxu0
    %v2802 = vadd.f32 %v2789, %v2801
    %v2803 = vpop.f32.mrf.mxu0
    %2804 = vdwg.mxu0
    %2805 = vmatpush.bf16.msra.mxu0 %v2513
    %2806 = vmatpush.bf16.msra.mxu0 %v2509
    %2807 = vmatpush.bf16.msra.mxu0 %v2505
    %2808 = vmatpush.bf16.msra.mxu0 %v2501
    %2809 = vmatpush.bf16.msra.mxu0 %v2497
    %2810 = vmatpush.bf16.msra.mxu0 %v2493
    %2811 = vmatpush.bf16.msra.mxu0 %v2489
    %2812 = vmatpush.bf16.msra.mxu0 %v2485
    %2813 = vmatmul.bf16.gmra.mxu0 %v2033
    %v2814 = vpop.f32.mrf.mxu0
    %v2815 = vadd.f32 %v2802, %v2814
    %v2816 = vpop.f32.mrf.mxu0
    %2817 = vdwg.mxu0
    %2818 = vmatpush.bf16.msra.mxu0 %v2545
    %2819 = vmatpush.bf16.msra.mxu0 %v2541
    %2820 = vmatpush.bf16.msra.mxu0 %v2537
    %2821 = vmatpush.bf16.msra.mxu0 %v2533
    %2822 = vmatpush.bf16.msra.mxu0 %v2529
    %2823 = vmatpush.bf16.msra.mxu0 %v2525
    %2824 = vmatpush.bf16.msra.mxu0 %v2521
    %2825 = vmatpush.bf16.msra.mxu0 %v2517
    %2826 = vmatmul.bf16.gmra.mxu0 %v2034
    %v2827 = vpop.f32.mrf.mxu0
    %v2828 = vadd.f32 %v2815, %v2827
    %v2829 = vpop.f32.mrf.mxu0
    %2830 = vdwg.mxu0
    %2831 = vmatpush.bf16.msra.mxu0 %v2450
    %2832 = vmatpush.bf16.msra.mxu0 %v2446
    %2833 = vmatpush.bf16.msra.mxu0 %v2442
    %2834 = vmatpush.bf16.msra.mxu0 %v2438
    %2835 = vmatpush.bf16.msra.mxu0 %v2434
    %2836 = vmatpush.bf16.msra.mxu0 %v2430
    %2837 = vmatpush.bf16.msra.mxu0 %v2426
    %2838 = vmatpush.bf16.msra.mxu0 %v2422
    %2839 = vmatmul.bf16.gmra.mxu0 %v2031
    %v2840 = vpop.f32.mrf.mxu0
    %v2841 = vadd.f32 %v490, %v2840
    %v2842 = vpop.f32.mrf.mxu0
    %2843 = vdwg.mxu0
    %2844 = vmatpush.bf16.msra.mxu0 %v2482
    %2845 = vmatpush.bf16.msra.mxu0 %v2478
    %2846 = vmatpush.bf16.msra.mxu0 %v2474
    %2847 = vmatpush.bf16.msra.mxu0 %v2470
    %2848 = vmatpush.bf16.msra.mxu0 %v2466
    %2849 = vmatpush.bf16.msra.mxu0 %v2462
    %2850 = vmatpush.bf16.msra.mxu0 %v2458
    %2851 = vmatpush.bf16.msra.mxu0 %v2454
    %2852 = vmatmul.bf16.gmra.mxu0 %v2032
    %v2853 = vpop.f32.mrf.mxu0
    %v2854 = vadd.f32 %v2841, %v2853
    %v2855 = vpop.f32.mrf.mxu0
    %2856 = vdwg.mxu0
    %2857 = vmatpush.bf16.msra.mxu0 %v2514
    %2858 = vmatpush.bf16.msra.mxu0 %v2510
    %2859 = vmatpush.bf16.msra.mxu0 %v2506
    %2860 = vmatpush.bf16.msra.mxu0 %v2502
    %2861 = vmatpush.bf16.msra.mxu0 %v2498
    %2862 = vmatpush.bf16.msra.mxu0 %v2494
    %2863 = vmatpush.bf16.msra.mxu0 %v2490
    %2864 = vmatpush.bf16.msra.mxu0 %v2486
    %2865 = vmatmul.bf16.gmra.mxu0 %v2033
    %v2866 = vpop.f32.mrf.mxu0
    %v2867 = vadd.f32 %v2854, %v2866
    %v2868 = vpop.f32.mrf.mxu0
    %2869 = vdwg.mxu0
    %2870 = vmatpush.bf16.msra.mxu0 %v2546
    %2871 = vmatpush.bf16.msra.mxu0 %v2542
    %2872 = vmatpush.bf16.msra.mxu0 %v2538
    %2873 = vmatpush.bf16.msra.mxu0 %v2534
    %2874 = vmatpush.bf16.msra.mxu0 %v2530
    %2875 = vmatpush.bf16.msra.mxu0 %v2526
    %2876 = vmatpush.bf16.msra.mxu0 %v2522
    %2877 = vmatpush.bf16.msra.mxu0 %v2518
    %2878 = vmatmul.bf16.gmra.mxu0 %v2034
    %v2879 = vpop.f32.mrf.mxu0
    %v2880 = vadd.f32 %v2867, %v2879
    %v2881 = vpop.f32.mrf.mxu0
    %2882 = vdwg.mxu0
    %v2883 = vmul.f32 %v2724, 0.5
    %v2884 = vmul.f32 %v2776, 0.5
    %v2885 = vmul.f32 %v2828, 0.5
    %v2886 = vmul.f32 %v2880, 0.5
    %v2887 = vtanh.pop %v2883
    %v2888 = vtanh.pop %v2884
    %v2889 = vtanh.pop %v2885
    %v2890 = vtanh.pop %v2886
    %v2891 = vadd.f32 %v2887, 1.0
    %v2892 = vadd.f32 %v2888, 1.0
    %v2893 = vadd.f32 %v2889, 1.0
    %v2894 = vadd.f32 %v2890, 1.0
    %v2895 = vmul.f32 %v2891, 0.5
    %v2896 = vmul.f32 %v2892, 0.5
    %v2897 = vmul.f32 %v2893, 0.5
    %v2898 = vmul.f32 %v2894, 0.5
    %v2899 = vpack.c.bf16 %v2895, %v2895
    %v2900 = vpack.c.bf16 %v2896, %v2896
    %v2901 = vpack.c.bf16 %v2897, %v2897
    %v2902 = vpack.c.bf16 %v2898, %v2898
    %v2967 = vunpack.c.l.b16 %v411
    %v2968 = vunpack.c.l.b16 %v412
    %v2969 = vunpack.c.l.b16 %v413
    %v2970 = vunpack.c.l.b16 %v414
    %v2971 = vunpack.c.l.b16 %v415
    %v2972 = vunpack.c.l.b16 %v416
    %v2973 = vunpack.c.l.b16 %v417
    %v2974 = vunpack.c.l.b16 %v418
    %v2975 = vunpack.c.l.b16 %v419
    %v2976 = vunpack.c.l.b16 %v420
    %v2977 = vunpack.c.l.b16 %v421
    %v2978 = vunpack.c.l.b16 %v422
    %v2979 = vunpack.c.l.b16 %v423
    %v2980 = vunpack.c.l.b16 %v424
    %v2981 = vunpack.c.l.b16 %v425
    %v2982 = vunpack.c.l.b16 %v426
    %v2983 = vunpack.c.l.b16 %v427
    %v2984 = vunpack.c.l.b16 %v428
    %v2985 = vunpack.c.l.b16 %v429
    %v2986 = vunpack.c.l.b16 %v430
    %v2987 = vunpack.c.l.b16 %v431
    %v2988 = vunpack.c.l.b16 %v432
    %v2989 = vunpack.c.l.b16 %v433
    %v2990 = vunpack.c.l.b16 %v434
    %v2991 = vunpack.c.l.b16 %v435
    %v2992 = vunpack.c.l.b16 %v436
    %v2993 = vunpack.c.l.b16 %v437
    %v2994 = vunpack.c.l.b16 %v438
    %v2995 = vunpack.c.l.b16 %v439
    %v2996 = vunpack.c.l.b16 %v440
    %v2997 = vunpack.c.l.b16 %v441
    %v2998 = vunpack.c.l.b16 %v442
    %v2999 = vunpack.c.l.b16 %v443
    %v3000 = vunpack.c.l.b16 %v444
    %v3001 = vunpack.c.l.b16 %v445
    %v3002 = vunpack.c.l.b16 %v446
    %v3003 = vunpack.c.l.b16 %v447
    %v3004 = vunpack.c.l.b16 %v448
    %v3005 = vunpack.c.l.b16 %v449
    %v3006 = vunpack.c.l.b16 %v450
    %v3007 = vunpack.c.l.b16 %v451
    %v3008 = vunpack.c.l.b16 %v452
    %v3009 = vunpack.c.l.b16 %v453
    %v3010 = vunpack.c.l.b16 %v454
    %v3011 = vunpack.c.l.b16 %v455
    %v3012 = vunpack.c.l.b16 %v456
    %v3013 = vunpack.c.l.b16 %v457
    %v3014 = vunpack.c.l.b16 %v458
    %v3015 = vunpack.c.l.b16 %v459
    %v3016 = vunpack.c.l.b16 %v460
    %v3017 = vunpack.c.l.b16 %v461
    %v3018 = vunpack.c.l.b16 %v462
    %v3019 = vunpack.c.l.b16 %v463
    %v3020 = vunpack.c.l.b16 %v464
    %v3021 = vunpack.c.l.b16 %v465
    %v3022 = vunpack.c.l.b16 %v466
    %v3023 = vunpack.c.l.b16 %v467
    %v3024 = vunpack.c.l.b16 %v468
    %v3025 = vunpack.c.l.b16 %v469
    %v3026 = vunpack.c.l.b16 %v470
    %v3027 = vunpack.c.l.b16 %v471
    %v3028 = vunpack.c.l.b16 %v472
    %v3029 = vunpack.c.l.b16 %v473
    %v3030 = vunpack.c.l.b16 %v474
    %v3031 = vpack.c.b16 %v2968, %v2967
    %v3032 = vpack.c.b16 %v2970, %v2969
    %v3033 = vpack.c.b16 %v2972, %v2971
    %v3034 = vpack.c.b16 %v2974, %v2973
    %v3035 = vpack.c.b16 %v2976, %v2975
    %v3036 = vpack.c.b16 %v2978, %v2977
    %v3037 = vpack.c.b16 %v2980, %v2979
    %v3038 = vpack.c.b16 %v2982, %v2981
    %v3039 = vpack.c.b16 %v2984, %v2983
    %v3040 = vpack.c.b16 %v2986, %v2985
    %v3041 = vpack.c.b16 %v2988, %v2987
    %v3042 = vpack.c.b16 %v2990, %v2989
    %v3043 = vpack.c.b16 %v2992, %v2991
    %v3044 = vpack.c.b16 %v2994, %v2993
    %v3045 = vpack.c.b16 %v2996, %v2995
    %v3046 = vpack.c.b16 %v2998, %v2997
    %v3047 = vpack.c.b16 %v3000, %v2999
    %v3048 = vpack.c.b16 %v3002, %v3001
    %v3049 = vpack.c.b16 %v3004, %v3003
    %v3050 = vpack.c.b16 %v3006, %v3005
    %v3051 = vpack.c.b16 %v3008, %v3007
    %v3052 = vpack.c.b16 %v3010, %v3009
    %v3053 = vpack.c.b16 %v3012, %v3011
    %v3054 = vpack.c.b16 %v3014, %v3013
    %v3055 = vpack.c.b16 %v3016, %v3015
    %v3056 = vpack.c.b16 %v3018, %v3017
    %v3057 = vpack.c.b16 %v3020, %v3019
    %v3058 = vpack.c.b16 %v3022, %v3021
    %v3059 = vpack.c.b16 %v3024, %v3023
    %v3060 = vpack.c.b16 %v3026, %v3025
    %v3061 = vpack.c.b16 %v3028, %v3027
    %v3062 = vpack.c.b16 %v3030, %v3029
    %3095 = vmatpush.bf16.msra.mxu0 %v3038
    %3096 = vmatpush.bf16.msra.mxu0 %v3037
    %3097 = vmatpush.bf16.msra.mxu0 %v3036
    %3098 = vmatpush.bf16.msra.mxu0 %v3035
    %3099 = vmatpush.bf16.msra.mxu0 %v3034
    %3100 = vmatpush.bf16.msra.mxu0 %v3033
    %3101 = vmatpush.bf16.msra.mxu0 %v3032
    %3102 = vmatpush.bf16.msra.mxu0 %v3031
    %3103 = vmatmul.bf16.gmra.mxu0 %v2899
    %v3104 = vpop.f32.mrf.mxu0
    %v3105 = vadd.f32 %v497, %v3104
    %v3106 = vpop.f32.mrf.mxu0
    %3107 = vdwg.mxu0
    %3108 = vmatpush.bf16.msra.mxu0 %v3046
    %3109 = vmatpush.bf16.msra.mxu0 %v3045
    %3110 = vmatpush.bf16.msra.mxu0 %v3044
    %3111 = vmatpush.bf16.msra.mxu0 %v3043
    %3112 = vmatpush.bf16.msra.mxu0 %v3042
    %3113 = vmatpush.bf16.msra.mxu0 %v3041
    %3114 = vmatpush.bf16.msra.mxu0 %v3040
    %3115 = vmatpush.bf16.msra.mxu0 %v3039
    %3116 = vmatmul.bf16.gmra.mxu0 %v2900
    %v3117 = vpop.f32.mrf.mxu0
    %v3118 = vadd.f32 %v3105, %v3117
    %v3119 = vpop.f32.mrf.mxu0
    %3120 = vdwg.mxu0
    %3121 = vmatpush.bf16.msra.mxu0 %v3054
    %3122 = vmatpush.bf16.msra.mxu0 %v3053
    %3123 = vmatpush.bf16.msra.mxu0 %v3052
    %3124 = vmatpush.bf16.msra.mxu0 %v3051
    %3125 = vmatpush.bf16.msra.mxu0 %v3050
    %3126 = vmatpush.bf16.msra.mxu0 %v3049
    %3127 = vmatpush.bf16.msra.mxu0 %v3048
    %3128 = vmatpush.bf16.msra.mxu0 %v3047
    %3129 = vmatmul.bf16.gmra.mxu0 %v2901
    %v3130 = vpop.f32.mrf.mxu0
    %v3131 = vadd.f32 %v3118, %v3130
    %v3132 = vpop.f32.mrf.mxu0
    %3133 = vdwg.mxu0
    %3134 = vmatpush.bf16.msra.mxu0 %v3062
    %3135 = vmatpush.bf16.msra.mxu0 %v3061
    %3136 = vmatpush.bf16.msra.mxu0 %v3060
    %3137 = vmatpush.bf16.msra.mxu0 %v3059
    %3138 = vmatpush.bf16.msra.mxu0 %v3058
    %3139 = vmatpush.bf16.msra.mxu0 %v3057
    %3140 = vmatpush.bf16.msra.mxu0 %v3056
    %3141 = vmatpush.bf16.msra.mxu0 %v3055
    %3142 = vmatmul.bf16.gmra.mxu0 %v2902
    %v3143 = vpop.f32.mrf.mxu0
    %v3144 = vadd.f32 %v3131, %v3143
    %v3145 = vpop.f32.mrf.mxu0
    %3146 = vdwg.mxu0
    %3147 = vmax.xlane.f32.xlu0 %v3144
    %v3148 = vpop.xlane.xlu0 %3147
    %v3149 = vsub.f32 %v3144, %v3148
    %v3150 = vmul.f32 %v3149, 1.442695
    %v3151 = vpow.pop %v3150
    %3152 = vadd.xlane.f32.xlu0 %v3151
    %v3153 = vpop.xlane.xlu0 %3152
    %v3154 = vrcp.pop %v3153
    %v3155 = vmul.f32 %v3151, %v3154
    %3156 = vst [vmem:[#allocation7] sm:$0xff] %v3155
    // Predicated region
    $region38: #{mlp_forward.1} parent=1 // pred_check
      _
    $region39: #{mlp_forward.1} parent=1 // pred_check_branch
      %3158 = sbr.rel (0) target = $region41
    $region40: #{mlp_forward.1} parent=1 // pred_region
      %3160 = vsyncadd [#allocation4], 0
      %s3162 = sshll.u32 [#allocation7], 4
      %s3163 = int_to_ptr.vmem [resolvable:$true] %s3162
      %s3164 = sshll.u32 %s7, 4
      %s3165 = int_to_ptr.hbm [resolvable:$true] %s3164
      %3167 = dma.vmem_to_hbm [thread:$0]  %s3163, 128, %s3165, [#allocation4]
    $region41: #{mlp_forward.1} parent=1 // pred_fallthru
      _
    // Predicated region
    $region42: #{mlp_forward.1} parent=1 // pred_check
      _
    $region43: #{mlp_forward.1} parent=1 // pred_check_branch
      %3169 = sbr.rel (0) target = $region45
    $region44: #{mlp_forward.1} parent=1 // pred_region
      %3171 = dma.done [#allocation4], 128
    $region45: #{mlp_forward.1} parent=1 // pred_fallthru
      _
    %3172 = vsyncpa [#allocation3], 1
    %3173 = vsyncpa [#allocation6], 1
    %3174 = vsyncpa [#allocation4], 1

</llo_original>
